<compile_context>
chip_gen: v6e
topology: v6e:2x2x1
jax: 0.10.0
libtpu: 0.0.40
codegen_flags: <defaults>
</compile_context>

<pallas_src>
import functools

import jax
import jax.numpy as jnp
from jax import lax
from jax.experimental import pallas as pl
from jax.experimental.pallas import tpu as pltpu


def _egcn_block_kernel(bs, channels, eps, n_layers,
                       e2_ref, x_ref, selt_ref, k2_ref, *rest):
    """Whole EGCN block as a single grid-less Pallas program.

    e2_ref:   (bs, bs*C) f32,   e2[n, i*C + c]   = E[i, n, c]   (lane-dense layout)
    x_ref:    (bs, f_in) f32
    selt_ref: (C, bs*C) f32,    selT[c, i*C + c'] = (c == c')   (channel replicator)
    k2_ref:   (bs, bs*C) f32,   k2[p, i*C + c]    = (p == i)    (per-node row-summer)
    rest:     7 parameter refs per layer
              (w_atten_blockdiag, bn1_gamma_tiled, bn1_beta_tiled, w, bias_x_channels,
               bn2_gamma, bn2_beta) ... then the output ref.
    """
    out_ref = rest[-1]
    params = rest[:-1]
    cdot = (((1,), (1,)), ((), ()))          # contract last dim with last dim

    e2 = e2_ref[...]                                              # (bs, bs*C)
    selt = selt_ref[...]                                          # (C, bs*C)
    inv_n = 1.0 / (bs * bs)

    # --- BatchNorm1d(channels) batch stats over all (i, n); shared by every layer ---
    sum_c = lax.dot_general(jnp.sum(e2, axis=0, keepdims=True), selt, cdot,
                            preferred_element_type=jnp.float32)   # (1, C)
    mu_c = sum_c * inv_n
    mu_full = jnp.dot(mu_c, selt, preferred_element_type=jnp.float32)   # (1, bs*C)
    d = e2 - mu_full
    var_c = lax.dot_general(jnp.sum(d * d, axis=0, keepdims=True), selt, cdot,
                            preferred_element_type=jnp.float32) * inv_n  # biased var
    rstd_full = jnp.dot(lax.rsqrt(var_c + eps), selt,
                        preferred_element_type=jnp.float32)       # (1, bs*C)
    e2_std = d * rstd_full                # standardized E, reused by all layers

    h = x_ref[...]                                                # (bs, f_in)
    for l in range(n_layers):
        (wab_ref, g1_ref, b1_ref, w_ref, bc_ref, g2_ref, b2_ref) = params[7 * l:7 * l + 7]

        # Per-layer BN1 affine: pre-tiled (1, bs*C) gamma/beta -> pure VPU mul/add.
        e2n = e2_std * g1_ref[...] + b1_ref[...]                  # (bs, bs*C)

        # --- A = sum_i E_i Wa Wa^T E_i^T  ==  Gt @ Gt^T (single MXU contraction) ---
        gt = jnp.dot(e2n, wab_ref[...], preferred_element_type=jnp.float32)   # (bs, bs*fa)
        a = lax.dot_general(gt, gt, cdot, preferred_element_type=jnp.float32)  # (bs, bs)

        # --- softmax over dim 1; EUP reciprocal for the denominator ---
        a = a - jnp.max(a, axis=1, keepdims=True)
        ea = jnp.exp(a)
        a_s = ea * pl.reciprocal(jnp.sum(ea, axis=1, keepdims=True), approx=True)

        # --- M = sum_k (E_norm * A_s[..., None])[:, :, k]  (algebraic fold) ---
        esum = lax.dot_general(k2_ref[...], e2n, cdot,
                               preferred_element_type=jnp.float32)  # (bs, bs)
        m = esum * a_s

        # --- H = sum_k Linear(A_adj[:,:,k] @ h)  ==  (M @ h) @ W + channels*bias ---
        hp = jnp.dot(m, h, preferred_element_type=jnp.float32)       # (bs, f_in_l)
        hl = jnp.dot(hp, w_ref[...], preferred_element_type=jnp.float32) + bc_ref[...]

        # --- BatchNorm1d(f_out) over the batch dim (training-mode stats), then tanh ---
        mu2 = jnp.mean(hl, axis=0, keepdims=True)
        var2 = jnp.mean((hl - mu2) ** 2, axis=0, keepdims=True)
        h = jnp.tanh((hl - mu2) * lax.rsqrt(var2 + eps) * g2_ref[...] + b2_ref[...])

    out_ref[...] = h


def egcn_block_forward(x, E, layer_params, *, channels=4, eps=1e-5):
    """x: (bs, f_in) f32, E: (bs, bs, channels) f32 -> (bs, f_out_last) f32."""
    bs = x.shape[0]
    n_layers = len(layer_params)
    f_out = layer_params[-1]["w"].shape[1]

    # Host-side glue (tiny, once per call): lane-dense E layout plus the constant
    # selector / block-diagonal operands the kernel contracts against.
    e2 = jnp.transpose(E, (1, 0, 2)).reshape(bs, bs * channels)        # e2[n, i*C+c]
    selt = jnp.tile(jnp.eye(channels, dtype=jnp.float32), (1, bs))     # (C, bs*C)
    k2 = jnp.repeat(jnp.eye(bs, dtype=jnp.float32), channels, axis=1)  # (bs, bs*C)
    args = [e2, x, selt, k2]
    for p in layer_params:
        wab = jnp.kron(jnp.eye(bs, dtype=jnp.float32), p["w_atten"])   # (bs*C, bs*fa)
        g1_tiled = jnp.tile(p["bn1_gamma"], (1, bs))                   # (1, bs*C)
        b1_tiled = jnp.tile(p["bn1_beta"], (1, bs))                    # (1, bs*C)
        args += [wab, g1_tiled, b1_tiled, p["w"],
                 p["bias_x_channels"], p["bn2_gamma"], p["bn2_beta"]]

    vmem = pl.BlockSpec(memory_space=pltpu.MemorySpace.VMEM)
    kernel = functools.partial(_egcn_block_kernel, bs, channels, eps, n_layers)
    # TODO(synk): for large bs (bs*bs*C*4B beyond ~half the scoped VMEM limit), tile E
    # over a row-block grid with a VMEM accumulator (pl.when init/finalize) and set
    # vmem_limit_bytes; at these sizes the grid-less whole-problem-in-VMEM form is best.
    return pl.pallas_call(
        kernel,
        out_shape=jax.ShapeDtypeStruct((bs, f_out), jnp.float32),
        in_specs=[vmem] * len(args),
        out_specs=vmem,
    )(*args)


def init_egcn_params(key, f_in, f_out, f_atten, channels=4):
    k1, k2, k3 = jax.random.split(key, 3)
    # xavier_uniform_(w_atten, gain=1.414)
    bound_a = 1.414 * (6.0 / (channels + f_atten)) ** 0.5
    w_atten = jax.random.uniform(k1, (channels, f_atten), jnp.float32, -bound_a, bound_a)
    # nn.Linear default init; stored pre-transposed as (f_in, f_out) so kernel does x @ W
    bound_w = 1.0 / (f_in ** 0.5)
    w = jax.random.uniform(k2, (f_in, f_out), jnp.float32, -bound_w, bound_w)
    bias = jax.random.uniform(k3, (1, f_out), jnp.float32, -bound_w, bound_w)
    return dict(
        w_atten=w_atten,
        bn1_gamma=jnp.ones((1, channels), jnp.float32),
        bn1_beta=jnp.zeros((1, channels), jnp.float32),
        w=w,
        bias=bias,                               # raw nn.Linear bias (reference)
        bias_x_channels=channels * bias,         # folded: kernel adds it once
        bn2_gamma=jnp.ones((1, f_out), jnp.float32),
        bn2_beta=jnp.zeros((1, f_out), jnp.float32),
    )


def egcn_ref(x, E, p, *, channels=4, eps=1e-5):
    """Pure-JAX mirror of the PyTorch EGCN.forward (training-mode BN)."""
    bs = x.shape[0]
    Ep = jnp.transpose(E, (0, 2, 1))                                   # (bs, C, bs)
    mu = Ep.mean(axis=(0, 2), keepdims=True)
    var = Ep.var(axis=(0, 2), keepdims=True)
    Ep = ((Ep - mu) / jnp.sqrt(var + eps)
          * p["bn1_gamma"].reshape(1, channels, 1) + p["bn1_beta"].reshape(1, channels, 1))
    E_ = jnp.transpose(Ep, (0, 2, 1))                                  # (bs, bs, C)
    A = jnp.zeros((bs, bs), jnp.float32)
    for i in range(bs):
        A = A + E_[i] @ p["w_atten"] @ p["w_atten"].T @ E_[i].T
    A_s = jax.nn.softmax(A, axis=1)
    A_adj = E_ * jnp.repeat(A_s[:, :, None], channels, axis=2)
    H = jnp.zeros((bs, p["w"].shape[1]), jnp.float32)
    for k in range(channels):
        H = H + (A_adj[:, :, k] @ x) @ p["w"] + p["bias"]
    mu2 = H.mean(axis=0, keepdims=True)
    var2 = H.var(axis=0, keepdims=True)
    H = (H - mu2) / jnp.sqrt(var2 + eps) * p["bn2_gamma"] + p["bn2_beta"]
    return jnp.tanh(H)


if __name__ == "__main__":
    # EGCNBLOCK(f_gcn=[16, 32, 32], f_atten=[8, 8]) -> 2 EGCN layers, channels=4.
    bs, channels = 8, 4
    f_gcn = [16, 32, 32]
    f_atten = [8, 8]

    key = jax.random.PRNGKey(0)
    kx, ke, kp = jax.random.split(key, 3)
    x = jax.random.normal(kx, (bs, f_gcn[0]), jnp.float32)
    E = jax.random.normal(ke, (bs, bs, channels), jnp.float32)

    layer_params = []
    for li in range(len(f_gcn) - 1):
        kp, ksub = jax.random.split(kp)
        layer_params.append(init_egcn_params(ksub, f_gcn[li], f_gcn[li + 1],
                                             f_atten[li], channels))

    out = egcn_block_forward(x, E, layer_params, channels=channels)
    out = jax.block_until_ready(out)

    # Cross-check against a pure-JAX reference of the PyTorch forward.
    ref = x
    for p in layer_params:
        ref = egcn_ref(ref, E, p, channels=channels)
    assert out.shape == (bs, f_gcn[-1])
    # Tolerance loose enough to accommodate the approximate EUP reciprocal used for
    # the softmax denominator.
    assert jnp.allclose(out, ref, atol=2e-3, rtol=1e-2), float(jnp.abs(out - ref).max())

    print("KERNEL_OK")
</pallas_src>

<mosaic_0001>
module attributes {stable_mosaic.version = 11 : i64} {
  func.func @_egcn_block_kernel(%arg0: memref<8x32xf32, #tpu.memory_space<vmem>>, %arg1: memref<8x16xf32, #tpu.memory_space<vmem>>, %arg2: memref<4x32xf32, #tpu.memory_space<vmem>>, %arg3: memref<8x32xf32, #tpu.memory_space<vmem>>, %arg4: memref<32x64xf32, #tpu.memory_space<vmem>>, %arg5: memref<1x32xf32, #tpu.memory_space<vmem>>, %arg6: memref<1x32xf32, #tpu.memory_space<vmem>>, %arg7: memref<16x32xf32, #tpu.memory_space<vmem>>, %arg8: memref<1x32xf32, #tpu.memory_space<vmem>>, %arg9: memref<1x32xf32, #tpu.memory_space<vmem>>, %arg10: memref<1x32xf32, #tpu.memory_space<vmem>>, %arg11: memref<32x64xf32, #tpu.memory_space<vmem>>, %arg12: memref<1x32xf32, #tpu.memory_space<vmem>>, %arg13: memref<1x32xf32, #tpu.memory_space<vmem>>, %arg14: memref<32x32xf32, #tpu.memory_space<vmem>>, %arg15: memref<1x32xf32, #tpu.memory_space<vmem>>, %arg16: memref<1x32xf32, #tpu.memory_space<vmem>>, %arg17: memref<1x32xf32, #tpu.memory_space<vmem>>, %arg18: memref<8x32xf32, #tpu.memory_space<vmem>>) attributes {dimension_semantics = [], scalar_prefetch = 0 : i64, scratch_operands = 0 : i64, tpu.core_type = #tpu.core_type<tc>} {
    %c0 = arith.constant 0 : index
    %c0_0 = arith.constant 0 : index
    %0 = vector.load %arg0[%c0, %c0_0] : memref<8x32xf32, #tpu.memory_space<vmem>>, vector<8x32xf32>
    %c0_1 = arith.constant 0 : index
    %c0_2 = arith.constant 0 : index
    %1 = vector.load %arg2[%c0_1, %c0_2] : memref<4x32xf32, #tpu.memory_space<vmem>>, vector<4x32xf32>
    %cst = arith.constant dense<0.000000e+00> : vector<32xf32>
    %2 = vector.multi_reduction <add>, %0, %cst [0] : vector<8x32xf32> to vector<32xf32>
    %3 = vector.shape_cast %2 : vector<32xf32> to vector<1x32xf32>
    %cst_3 = arith.constant dense<0.000000e+00> : vector<1x4xf32>
    %4 = tpu.matmul %3, %1, %cst_3 {dimension_numbers = #tpu.dot_dimension_numbers<[1], [1], [0], [0], [0, 0, 1, 0], [], []>} : vector<1x32xf32>, vector<4x32xf32>, vector<1x4xf32> -> vector<1x4xf32>
    %cst_4 = arith.constant 1.562500e-02 : f32
    %5 = vector.broadcast %cst_4 : f32 to vector<1x4xf32>
    %6 = arith.mulf %4, %5 : vector<1x4xf32>
    %cst_5 = arith.constant dense<0.000000e+00> : vector<1x32xf32>
    %7 = tpu.matmul %6, %1, %cst_5 {dimension_numbers = #tpu.dot_dimension_numbers<[1], [0], [0], [1], [0, 0, 1, 1], [], []>} : vector<1x4xf32>, vector<4x32xf32>, vector<1x32xf32> -> vector<1x32xf32>
    %8 = vector.broadcast %7 : vector<1x32xf32> to vector<8x32xf32>
    %9 = arith.subf %0, %8 : vector<8x32xf32>
    %10 = arith.mulf %9, %9 : vector<8x32xf32>
    %cst_6 = arith.constant dense<0.000000e+00> : vector<32xf32>
    %11 = vector.multi_reduction <add>, %10, %cst_6 [0] : vector<8x32xf32> to vector<32xf32>
    %12 = vector.shape_cast %11 : vector<32xf32> to vector<1x32xf32>
    %cst_7 = arith.constant dense<0.000000e+00> : vector<1x4xf32>
    %13 = tpu.matmul %12, %1, %cst_7 {dimension_numbers = #tpu.dot_dimension_numbers<[1], [1], [0], [0], [0, 0, 1, 0], [], []>} : vector<1x32xf32>, vector<4x32xf32>, vector<1x4xf32> -> vector<1x4xf32>
    %cst_8 = arith.constant 1.562500e-02 : f32
    %14 = vector.broadcast %cst_8 : f32 to vector<1x4xf32>
    %15 = arith.mulf %13, %14 : vector<1x4xf32>
    %cst_9 = arith.constant 9.99999974E-6 : f32
    %16 = vector.broadcast %cst_9 : f32 to vector<1x4xf32>
    %17 = arith.addf %15, %16 : vector<1x4xf32>
    %18 = math.rsqrt %17 : vector<1x4xf32>
    %cst_10 = arith.constant dense<0.000000e+00> : vector<1x32xf32>
    %19 = tpu.matmul %18, %1, %cst_10 {dimension_numbers = #tpu.dot_dimension_numbers<[1], [0], [0], [1], [0, 0, 1, 1], [], []>} : vector<1x4xf32>, vector<4x32xf32>, vector<1x32xf32> -> vector<1x32xf32>
    %20 = vector.broadcast %19 : vector<1x32xf32> to vector<8x32xf32>
    %21 = arith.mulf %9, %20 : vector<8x32xf32>
    %c0_11 = arith.constant 0 : index
    %c0_12 = arith.constant 0 : index
    %22 = vector.load %arg1[%c0_11, %c0_12] : memref<8x16xf32, #tpu.memory_space<vmem>>, vector<8x16xf32>
    %c0_13 = arith.constant 0 : index
    %c0_14 = arith.constant 0 : index
    %23 = vector.load %arg5[%c0_13, %c0_14] : memref<1x32xf32, #tpu.memory_space<vmem>>, vector<1x32xf32>
    %24 = vector.broadcast %23 : vector<1x32xf32> to vector<8x32xf32>
    %25 = arith.mulf %21, %24 : vector<8x32xf32>
    %c0_15 = arith.constant 0 : index
    %c0_16 = arith.constant 0 : index
    %26 = vector.load %arg6[%c0_15, %c0_16] : memref<1x32xf32, #tpu.memory_space<vmem>>, vector<1x32xf32>
    %27 = vector.broadcast %26 : vector<1x32xf32> to vector<8x32xf32>
    %28 = arith.addf %25, %27 : vector<8x32xf32>
    %c0_17 = arith.constant 0 : index
    %c0_18 = arith.constant 0 : index
    %29 = vector.load %arg4[%c0_17, %c0_18] : memref<32x64xf32, #tpu.memory_space<vmem>>, vector<32x64xf32>
    %cst_19 = arith.constant dense<0.000000e+00> : vector<8x64xf32>
    %30 = tpu.matmul %28, %29, %cst_19 {dimension_numbers = #tpu.dot_dimension_numbers<[1], [0], [0], [1], [0, 0, 1, 1], [], []>} : vector<8x32xf32>, vector<32x64xf32>, vector<8x64xf32> -> vector<8x64xf32>
    %cst_20 = arith.constant dense<0.000000e+00> : vector<8x8xf32>
    %31 = tpu.matmul %30, %30, %cst_20 {dimension_numbers = #tpu.dot_dimension_numbers<[1], [1], [0], [0], [0, 0, 1, 0], [], []>} : vector<8x64xf32>, vector<8x64xf32>, vector<8x8xf32> -> vector<8x8xf32>
    %cst_21 = arith.constant dense<0xFF800000> : vector<8xf32>
    %32 = vector.multi_reduction <maximumf>, %31, %cst_21 [1] : vector<8x8xf32> to vector<8xf32>
    %33 = vector.shape_cast %32 : vector<8xf32> to vector<8x1xf32>
    %34 = vector.broadcast %33 : vector<8x1xf32> to vector<8x8xf32>
    %35 = arith.subf %31, %34 : vector<8x8xf32>
    %36 = math.exp %35 : vector<8x8xf32>
    %cst_22 = arith.constant dense<0.000000e+00> : vector<8xf32>
    %37 = vector.multi_reduction <add>, %36, %cst_22 [1] : vector<8x8xf32> to vector<8xf32>
    %38 = vector.shape_cast %37 : vector<8xf32> to vector<8x1xf32>
    %39 = tpu.reciprocal %38 {approx = true} : vector<8x1xf32> -> vector<8x1xf32>
    %40 = vector.broadcast %39 : vector<8x1xf32> to vector<8x8xf32>
    %41 = arith.mulf %36, %40 : vector<8x8xf32>
    %c0_23 = arith.constant 0 : index
    %c0_24 = arith.constant 0 : index
    %42 = vector.load %arg3[%c0_23, %c0_24] : memref<8x32xf32, #tpu.memory_space<vmem>>, vector<8x32xf32>
    %cst_25 = arith.constant dense<0.000000e+00> : vector<8x8xf32>
    %43 = tpu.matmul %42, %28, %cst_25 {dimension_numbers = #tpu.dot_dimension_numbers<[1], [1], [0], [0], [0, 0, 1, 0], [], []>} : vector<8x32xf32>, vector<8x32xf32>, vector<8x8xf32> -> vector<8x8xf32>
    %44 = arith.mulf %43, %41 : vector<8x8xf32>
    %cst_26 = arith.constant dense<0.000000e+00> : vector<8x16xf32>
    %45 = tpu.matmul %44, %22, %cst_26 {dimension_numbers = #tpu.dot_dimension_numbers<[1], [0], [0], [1], [0, 0, 1, 1], [], []>} : vector<8x8xf32>, vector<8x16xf32>, vector<8x16xf32> -> vector<8x16xf32>
    %c0_27 = arith.constant 0 : index
    %c0_28 = arith.constant 0 : index
    %46 = vector.load %arg7[%c0_27, %c0_28] : memref<16x32xf32, #tpu.memory_space<vmem>>, vector<16x32xf32>
    %cst_29 = arith.constant dense<0.000000e+00> : vector<8x32xf32>
    %47 = tpu.matmul %45, %46, %cst_29 {dimension_numbers = #tpu.dot_dimension_numbers<[1], [0], [0], [1], [0, 0, 1, 1], [], []>} : vector<8x16xf32>, vector<16x32xf32>, vector<8x32xf32> -> vector<8x32xf32>
    %c0_30 = arith.constant 0 : index
    %c0_31 = arith.constant 0 : index
    %48 = vector.load %arg8[%c0_30, %c0_31] : memref<1x32xf32, #tpu.memory_space<vmem>>, vector<1x32xf32>
    %49 = vector.broadcast %48 : vector<1x32xf32> to vector<8x32xf32>
    %50 = arith.addf %47, %49 : vector<8x32xf32>
    %cst_32 = arith.constant dense<0.000000e+00> : vector<32xf32>
    %51 = vector.multi_reduction <add>, %50, %cst_32 [0] : vector<8x32xf32> to vector<32xf32>
    %52 = vector.shape_cast %51 : vector<32xf32> to vector<1x32xf32>
    %cst_33 = arith.constant 8.000000e+00 : f32
    %53 = vector.broadcast %cst_33 : f32 to vector<1x32xf32>
    %54 = arith.divf %52, %53 : vector<1x32xf32>
    %55 = vector.broadcast %54 : vector<1x32xf32> to vector<8x32xf32>
    %56 = arith.subf %50, %55 : vector<8x32xf32>
    %57 = arith.mulf %56, %56 : vector<8x32xf32>
    %cst_34 = arith.constant dense<0.000000e+00> : vector<32xf32>
    %58 = vector.multi_reduction <add>, %57, %cst_34 [0] : vector<8x32xf32> to vector<32xf32>
    %59 = vector.shape_cast %58 : vector<32xf32> to vector<1x32xf32>
    %cst_35 = arith.constant 8.000000e+00 : f32
    %60 = vector.broadcast %cst_35 : f32 to vector<1x32xf32>
    %61 = arith.divf %59, %60 : vector<1x32xf32>
    %62 = vector.broadcast %54 : vector<1x32xf32> to vector<8x32xf32>
    %63 = arith.subf %50, %62 : vector<8x32xf32>
    %cst_36 = arith.constant 9.99999974E-6 : f32
    %64 = vector.broadcast %cst_36 : f32 to vector<1x32xf32>
    %65 = arith.addf %61, %64 : vector<1x32xf32>
    %66 = math.rsqrt %65 : vector<1x32xf32>
    %67 = vector.broadcast %66 : vector<1x32xf32> to vector<8x32xf32>
    %68 = arith.mulf %63, %67 : vector<8x32xf32>
    %c0_37 = arith.constant 0 : index
    %c0_38 = arith.constant 0 : index
    %69 = vector.load %arg9[%c0_37, %c0_38] : memref<1x32xf32, #tpu.memory_space<vmem>>, vector<1x32xf32>
    %70 = vector.broadcast %69 : vector<1x32xf32> to vector<8x32xf32>
    %71 = arith.mulf %68, %70 : vector<8x32xf32>
    %c0_39 = arith.constant 0 : index
    %c0_40 = arith.constant 0 : index
    %72 = vector.load %arg10[%c0_39, %c0_40] : memref<1x32xf32, #tpu.memory_space<vmem>>, vector<1x32xf32>
    %73 = vector.broadcast %72 : vector<1x32xf32> to vector<8x32xf32>
    %74 = arith.addf %71, %73 : vector<8x32xf32>
    %75 = math.tanh %74 : vector<8x32xf32>
    %c0_41 = arith.constant 0 : index
    %c0_42 = arith.constant 0 : index
    %76 = vector.load %arg12[%c0_41, %c0_42] : memref<1x32xf32, #tpu.memory_space<vmem>>, vector<1x32xf32>
    %77 = vector.broadcast %76 : vector<1x32xf32> to vector<8x32xf32>
    %78 = arith.mulf %21, %77 : vector<8x32xf32>
    %c0_43 = arith.constant 0 : index
    %c0_44 = arith.constant 0 : index
    %79 = vector.load %arg13[%c0_43, %c0_44] : memref<1x32xf32, #tpu.memory_space<vmem>>, vector<1x32xf32>
    %80 = vector.broadcast %79 : vector<1x32xf32> to vector<8x32xf32>
    %81 = arith.addf %78, %80 : vector<8x32xf32>
    %c0_45 = arith.constant 0 : index
    %c0_46 = arith.constant 0 : index
    %82 = vector.load %arg11[%c0_45, %c0_46] : memref<32x64xf32, #tpu.memory_space<vmem>>, vector<32x64xf32>
    %cst_47 = arith.constant dense<0.000000e+00> : vector<8x64xf32>
    %83 = tpu.matmul %81, %82, %cst_47 {dimension_numbers = #tpu.dot_dimension_numbers<[1], [0], [0], [1], [0, 0, 1, 1], [], []>} : vector<8x32xf32>, vector<32x64xf32>, vector<8x64xf32> -> vector<8x64xf32>
    %cst_48 = arith.constant dense<0.000000e+00> : vector<8x8xf32>
    %84 = tpu.matmul %83, %83, %cst_48 {dimension_numbers = #tpu.dot_dimension_numbers<[1], [1], [0], [0], [0, 0, 1, 0], [], []>} : vector<8x64xf32>, vector<8x64xf32>, vector<8x8xf32> -> vector<8x8xf32>
    %cst_49 = arith.constant dense<0xFF800000> : vector<8xf32>
    %85 = vector.multi_reduction <maximumf>, %84, %cst_49 [1] : vector<8x8xf32> to vector<8xf32>
    %86 = vector.shape_cast %85 : vector<8xf32> to vector<8x1xf32>
    %87 = vector.broadcast %86 : vector<8x1xf32> to vector<8x8xf32>
    %88 = arith.subf %84, %87 : vector<8x8xf32>
    %89 = math.exp %88 : vector<8x8xf32>
    %cst_50 = arith.constant dense<0.000000e+00> : vector<8xf32>
    %90 = vector.multi_reduction <add>, %89, %cst_50 [1] : vector<8x8xf32> to vector<8xf32>
    %91 = vector.shape_cast %90 : vector<8xf32> to vector<8x1xf32>
    %92 = tpu.reciprocal %91 {approx = true} : vector<8x1xf32> -> vector<8x1xf32>
    %93 = vector.broadcast %92 : vector<8x1xf32> to vector<8x8xf32>
    %94 = arith.mulf %89, %93 : vector<8x8xf32>
    %c0_51 = arith.constant 0 : index
    %c0_52 = arith.constant 0 : index
    %95 = vector.load %arg3[%c0_51, %c0_52] : memref<8x32xf32, #tpu.memory_space<vmem>>, vector<8x32xf32>
    %cst_53 = arith.constant dense<0.000000e+00> : vector<8x8xf32>
    %96 = tpu.matmul %95, %81, %cst_53 {dimension_numbers = #tpu.dot_dimension_numbers<[1], [1], [0], [0], [0, 0, 1, 0], [], []>} : vector<8x32xf32>, vector<8x32xf32>, vector<8x8xf32> -> vector<8x8xf32>
    %97 = arith.mulf %96, %94 : vector<8x8xf32>
    %cst_54 = arith.constant dense<0.000000e+00> : vector<8x32xf32>
    %98 = tpu.matmul %97, %75, %cst_54 {dimension_numbers = #tpu.dot_dimension_numbers<[1], [0], [0], [1], [0, 0, 1, 1], [], []>} : vector<8x8xf32>, vector<8x32xf32>, vector<8x32xf32> -> vector<8x32xf32>
    %c0_55 = arith.constant 0 : index
    %c0_56 = arith.constant 0 : index
    %99 = vector.load %arg14[%c0_55, %c0_56] : memref<32x32xf32, #tpu.memory_space<vmem>>, vector<32x32xf32>
    %cst_57 = arith.constant dense<0.000000e+00> : vector<8x32xf32>
    %100 = tpu.matmul %98, %99, %cst_57 {dimension_numbers = #tpu.dot_dimension_numbers<[1], [0], [0], [1], [0, 0, 1, 1], [], []>} : vector<8x32xf32>, vector<32x32xf32>, vector<8x32xf32> -> vector<8x32xf32>
    %c0_58 = arith.constant 0 : index
    %c0_59 = arith.constant 0 : index
    %101 = vector.load %arg15[%c0_58, %c0_59] : memref<1x32xf32, #tpu.memory_space<vmem>>, vector<1x32xf32>
    %102 = vector.broadcast %101 : vector<1x32xf32> to vector<8x32xf32>
    %103 = arith.addf %100, %102 : vector<8x32xf32>
    %cst_60 = arith.constant dense<0.000000e+00> : vector<32xf32>
    %104 = vector.multi_reduction <add>, %103, %cst_60 [0] : vector<8x32xf32> to vector<32xf32>
    %105 = vector.shape_cast %104 : vector<32xf32> to vector<1x32xf32>
    %cst_61 = arith.constant 8.000000e+00 : f32
    %106 = vector.broadcast %cst_61 : f32 to vector<1x32xf32>
    %107 = arith.divf %105, %106 : vector<1x32xf32>
    %108 = vector.broadcast %107 : vector<1x32xf32> to vector<8x32xf32>
    %109 = arith.subf %103, %108 : vector<8x32xf32>
    %110 = arith.mulf %109, %109 : vector<8x32xf32>
    %cst_62 = arith.constant dense<0.000000e+00> : vector<32xf32>
    %111 = vector.multi_reduction <add>, %110, %cst_62 [0] : vector<8x32xf32> to vector<32xf32>
    %112 = vector.shape_cast %111 : vector<32xf32> to vector<1x32xf32>
    %cst_63 = arith.constant 8.000000e+00 : f32
    %113 = vector.broadcast %cst_63 : f32 to vector<1x32xf32>
    %114 = arith.divf %112, %113 : vector<1x32xf32>
    %115 = vector.broadcast %107 : vector<1x32xf32> to vector<8x32xf32>
    %116 = arith.subf %103, %115 : vector<8x32xf32>
    %cst_64 = arith.constant 9.99999974E-6 : f32
    %117 = vector.broadcast %cst_64 : f32 to vector<1x32xf32>
    %118 = arith.addf %114, %117 : vector<1x32xf32>
    %119 = math.rsqrt %118 : vector<1x32xf32>
    %120 = vector.broadcast %119 : vector<1x32xf32> to vector<8x32xf32>
    %121 = arith.mulf %116, %120 : vector<8x32xf32>
    %c0_65 = arith.constant 0 : index
    %c0_66 = arith.constant 0 : index
    %122 = vector.load %arg16[%c0_65, %c0_66] : memref<1x32xf32, #tpu.memory_space<vmem>>, vector<1x32xf32>
    %123 = vector.broadcast %122 : vector<1x32xf32> to vector<8x32xf32>
    %124 = arith.mulf %121, %123 : vector<8x32xf32>
    %c0_67 = arith.constant 0 : index
    %c0_68 = arith.constant 0 : index
    %125 = vector.load %arg17[%c0_67, %c0_68] : memref<1x32xf32, #tpu.memory_space<vmem>>, vector<1x32xf32>
    %126 = vector.broadcast %125 : vector<1x32xf32> to vector<8x32xf32>
    %127 = arith.addf %124, %126 : vector<8x32xf32>
    %128 = math.tanh %127 : vector<8x32xf32>
    %c0_69 = arith.constant 0 : index
    %c0_70 = arith.constant 0 : index
    %129 = vector.load %arg18[%c0_69, %c0_70] : memref<8x32xf32, #tpu.memory_space<vmem>>, vector<8x32xf32>
    tpu.vector_store %arg18[%c0_69, %c0_70], %128 {strides = array<i32>} : memref<8x32xf32, #tpu.memory_space<vmem>>, vector<8x32xf32>,
    return
  }
}

</mosaic_0001>

<llo_original>
// kernel: tpu_custom_call.1
$region0: #{tpu_custom_call.1}
  #allocation0 [shape = 'u32[]', space=smem, size = 0x4, offset = 0x4, fixed_abs, tag = 'smem constant byte address 0x4 - core index']
  #allocation1 [shape = 'u32[144,128]{1,0:T(1,128)}', space=vmem, size = 0x12000, scoped, tag = 'internal scratch']
  %s0 = inlined_call_operand.hbm [shape: f32[8,32], index: 0, kind: input, shape index: {}]
  %s1 = inlined_call_operand.hbm [shape: f32[8,16], index: 1, kind: input, shape index: {}]
  %s2 = inlined_call_operand.hbm [shape: f32[4,32], index: 2, kind: input, shape index: {}]
  %s3 = inlined_call_operand.hbm [shape: f32[8,32], index: 3, kind: input, shape index: {}]
  %s4 = inlined_call_operand.hbm [shape: f32[32,64], index: 4, kind: input, shape index: {}]
  %s5 = inlined_call_operand.vmem [shape: f32[1,32], index: 5, kind: input, shape index: {}]
  %s6 = inlined_call_operand.vmem [shape: f32[1,32], index: 6, kind: input, shape index: {}]
  %s7 = inlined_call_operand.hbm [shape: f32[16,32], index: 7, kind: input, shape index: {}]
  %s8 = inlined_call_operand.vmem [shape: f32[1,32], index: 8, kind: input, shape index: {}]
  %s9 = inlined_call_operand.vmem [shape: f32[1,32], index: 9, kind: input, shape index: {}]
  %s10 = inlined_call_operand.vmem [shape: f32[1,32], index: 10, kind: input, shape index: {}]
  %s11 = inlined_call_operand.hbm [shape: f32[32,64], index: 11, kind: input, shape index: {}]
  %s12 = inlined_call_operand.vmem [shape: f32[1,32], index: 12, kind: input, shape index: {}]
  %s13 = inlined_call_operand.vmem [shape: f32[1,32], index: 13, kind: input, shape index: {}]
  %s14 = inlined_call_operand.hbm [shape: f32[32,32], index: 14, kind: input, shape index: {}]
  %s15 = inlined_call_operand.vmem [shape: f32[1,32], index: 15, kind: input, shape index: {}]
  %s16 = inlined_call_operand.vmem [shape: f32[1,32], index: 16, kind: input, shape index: {}]
  %s17 = inlined_call_operand.vmem [shape: f32[1,32], index: 17, kind: input, shape index: {}]
  %s18 = inlined_call_operand.hbm [shape: f32[8,32], index: 18, kind: output, shape index: {}]
  %s19 = sld [smem:[#allocation0]]
  $region114: #{tpu_custom_call.1} parent=0
    _
  %s21 = ssub.s32 1, %s19
  %s22 = scalar_select 0, %s21, %s19
  $region1: #{tpu_custom_call.1} parent=0
    #allocation2 [shape = 'u8[4096]{0}', space=vmem, size = 0x1000, scoped, tag = 'input window, operand 0, single buffered']
    #allocation3 [shape = 's32[1]{0}', space=sflag, size = 0x4, scoped, tag = 'scoped memory for tpu_custom_call.1']
    #allocation4 [shape = 's32[1]{0}', space=sflag, size = 0x4, scoped, tag = 'scoped memory for tpu_custom_call.1']
    #allocation5 [shape = 'u8[4096]{0}', space=vmem, size = 0x1000, scoped, tag = 'input window, operand 1, single buffered']
    #allocation6 [shape = 's32[1]{0}', space=sflag, size = 0x4, scoped, tag = 'scoped memory for tpu_custom_call.1']
    #allocation7 [shape = 'u8[2048]{0}', space=vmem, size = 0x800, scoped, tag = 'input window, operand 2, single buffered']
    #allocation8 [shape = 'u8[4096]{0}', space=vmem, size = 0x1000, scoped, tag = 'input window, operand 3, single buffered']
    #allocation9 [shape = 's32[1]{0}', space=sflag, size = 0x4, scoped, tag = 'scoped memory for tpu_custom_call.1']
    #allocation10 [shape = 'u8[16384]{0}', space=vmem, size = 0x4000, scoped, tag = 'input window, operand 4, single buffered']
    #allocation11 [shape = 'u8[8192]{0}', space=vmem, size = 0x2000, scoped, tag = 'input window, operand 7, single buffered']
    #allocation12 [shape = 's32[1]{0}', space=sflag, size = 0x4, scoped, tag = 'scoped memory for tpu_custom_call.1']
    #allocation13 [shape = 'u8[16384]{0}', space=vmem, size = 0x4000, scoped, tag = 'input window, operand 11, single buffered']
    #allocation14 [shape = 'u8[16384]{0}', space=vmem, size = 0x4000, scoped, tag = 'input window, operand 14, single buffered']
    #allocation15 [shape = 's32[1]{0}', space=sflag, size = 0x4, scoped, tag = 'scoped memory for tpu_custom_call.1']
    #allocation16 [shape = 'u8[4096]{0}', space=vmem, size = 0x1000, scoped, tag = 'output window, operand 0, single buffered']
    %23 = vsyncpa [#allocation3], 0
    %24 = vsyncpa [#allocation6], 0
    %25 = vsyncpa [#allocation9], 0
    %26 = vsyncpa [#allocation12], 0
    %27 = vsyncpa [#allocation15], 0
    %28 = vsyncpa [#allocation4], 0
    // Predicated region
    $region2: #{tpu_custom_call.1} parent=1 // pred_check
      _
    $region3: #{tpu_custom_call.1} parent=1 // pred_check_branch
      %30 = sbr.rel (0) target = $region5
    $region4: #{tpu_custom_call.1} parent=1 // pred_region
      %s32 = ssub.s32 128, 128
      %33 = vsyncadd [#allocation3], %s32
      %s35 = sshll.u32 [#allocation2], 4
      %s36 = int_to_ptr.vmem [resolvable:$true] %s35
      %38 = dma.hbm_to_vmem [thread:$0]  %s0, 128, %s36, [#allocation3]
    $region5: #{tpu_custom_call.1} parent=1 // pred_fallthru
      _
    // Predicated region
    $region6: #{tpu_custom_call.1} parent=1 // pred_check
      _
    $region7: #{tpu_custom_call.1} parent=1 // pred_check_branch
      %40 = sbr.rel (0) target = $region9
    $region8: #{tpu_custom_call.1} parent=1 // pred_region
      %s42 = ssub.s32 128, 128
      %43 = vsyncadd [#allocation6], %s42
      %s45 = sshll.u32 [#allocation5], 4
      %s46 = int_to_ptr.vmem [resolvable:$true] %s45
      %48 = dma.hbm_to_vmem [thread:$0]  %s1, 128, %s46, [#allocation6]
    $region9: #{tpu_custom_call.1} parent=1 // pred_fallthru
      _
    // Predicated region
    $region10: #{tpu_custom_call.1} parent=1 // pred_check
      _
    $region11: #{tpu_custom_call.1} parent=1 // pred_check_branch
      %50 = sbr.rel (0) target = $region13
    $region12: #{tpu_custom_call.1} parent=1 // pred_region
      %s52 = ssub.s32 64, 64
      %53 = vsyncadd [#allocation6], %s52
      %s55 = sshll.u32 [#allocation7], 4
      %s56 = int_to_ptr.vmem [resolvable:$true] %s55
      %58 = dma.hbm_to_vmem [thread:$0]  %s2, 64, %s56, [#allocation6]
    $region13: #{tpu_custom_call.1} parent=1 // pred_fallthru
      _
    // Predicated region
    $region14: #{tpu_custom_call.1} parent=1 // pred_check
      _
    $region15: #{tpu_custom_call.1} parent=1 // pred_check_branch
      %60 = sbr.rel (0) target = $region17
    $region16: #{tpu_custom_call.1} parent=1 // pred_region
      %s62 = ssub.s32 128, 128
      %63 = vsyncadd [#allocation9], %s62
      %s65 = sshll.u32 [#allocation8], 4
      %s66 = int_to_ptr.vmem [resolvable:$true] %s65
      %68 = dma.hbm_to_vmem [thread:$0]  %s3, 128, %s66, [#allocation9]
    $region17: #{tpu_custom_call.1} parent=1 // pred_fallthru
      _
    // Predicated region
    $region18: #{tpu_custom_call.1} parent=1 // pred_check
      _
    $region19: #{tpu_custom_call.1} parent=1 // pred_check_branch
      %70 = sbr.rel (0) target = $region21
    $region20: #{tpu_custom_call.1} parent=1 // pred_region
      %s72 = ssub.s32 512, 512
      %73 = vsyncadd [#allocation9], %s72
      %s74 = sshll.u32 [#allocation10], 4
      %s75 = int_to_ptr.vmem [resolvable:$true] %s74
      %80 = dma.hbm_to_vmem [thread:$0]  %s4, 512, %s75, [#allocation9], 128, 128, 8
    $region21: #{tpu_custom_call.1} parent=1 // pred_fallthru
      _
    // Predicated region
    $region22: #{tpu_custom_call.1} parent=1 // pred_check
      _
    $region23: #{tpu_custom_call.1} parent=1 // pred_check_branch
      %82 = sbr.rel (0) target = $region25
    $region24: #{tpu_custom_call.1} parent=1 // pred_region
      _
    $region25: #{tpu_custom_call.1} parent=1 // pred_fallthru
      _
    // Predicated region
    $region26: #{tpu_custom_call.1} parent=1 // pred_check
      _
    $region27: #{tpu_custom_call.1} parent=1 // pred_check_branch
      %84 = sbr.rel (0) target = $region29
    $region28: #{tpu_custom_call.1} parent=1 // pred_region
      _
    $region29: #{tpu_custom_call.1} parent=1 // pred_fallthru
      _
    // Predicated region
    $region30: #{tpu_custom_call.1} parent=1 // pred_check
      _
    $region31: #{tpu_custom_call.1} parent=1 // pred_check_branch
      %86 = sbr.rel (0) target = $region33
    $region32: #{tpu_custom_call.1} parent=1 // pred_region
      %s88 = ssub.s32 256, 256
      %89 = vsyncadd [#allocation12], %s88
      %s90 = sshll.u32 [#allocation11], 4
      %s91 = int_to_ptr.vmem [resolvable:$true] %s90
      %96 = dma.hbm_to_vmem [thread:$0]  %s7, 256, %s91, [#allocation12], 128, 128, 8
    $region33: #{tpu_custom_call.1} parent=1 // pred_fallthru
      _
    // Predicated region
    $region34: #{tpu_custom_call.1} parent=1 // pred_check
      _
    $region35: #{tpu_custom_call.1} parent=1 // pred_check_branch
      %98 = sbr.rel (0) target = $region37
    $region36: #{tpu_custom_call.1} parent=1 // pred_region
      _
    $region37: #{tpu_custom_call.1} parent=1 // pred_fallthru
      _
    // Predicated region
    $region38: #{tpu_custom_call.1} parent=1 // pred_check
      _
    $region39: #{tpu_custom_call.1} parent=1 // pred_check_branch
      %100 = sbr.rel (0) target = $region41
    $region40: #{tpu_custom_call.1} parent=1 // pred_region
      _
    $region41: #{tpu_custom_call.1} parent=1 // pred_fallthru
      _
    // Predicated region
    $region42: #{tpu_custom_call.1} parent=1 // pred_check
      _
    $region43: #{tpu_custom_call.1} parent=1 // pred_check_branch
      %102 = sbr.rel (0) target = $region45
    $region44: #{tpu_custom_call.1} parent=1 // pred_region
      _
    $region45: #{tpu_custom_call.1} parent=1 // pred_fallthru
      _
    // Predicated region
    $region46: #{tpu_custom_call.1} parent=1 // pred_check
      _
    $region47: #{tpu_custom_call.1} parent=1 // pred_check_branch
      %104 = sbr.rel (0) target = $region49
    $region48: #{tpu_custom_call.1} parent=1 // pred_region
      %s106 = ssub.s32 512, 512
      %107 = vsyncadd [#allocation12], %s106
      %s108 = sshll.u32 [#allocation13], 4
      %s109 = int_to_ptr.vmem [resolvable:$true] %s108
      %114 = dma.hbm_to_vmem [thread:$0]  %s11, 512, %s109, [#allocation12], 128, 128, 8
    $region49: #{tpu_custom_call.1} parent=1 // pred_fallthru
      _
    // Predicated region
    $region50: #{tpu_custom_call.1} parent=1 // pred_check
      _
    $region51: #{tpu_custom_call.1} parent=1 // pred_check_branch
      %116 = sbr.rel (0) target = $region53
    $region52: #{tpu_custom_call.1} parent=1 // pred_region
      _
    $region53: #{tpu_custom_call.1} parent=1 // pred_fallthru
      _
    // Predicated region
    $region54: #{tpu_custom_call.1} parent=1 // pred_check
      _
    $region55: #{tpu_custom_call.1} parent=1 // pred_check_branch
      %118 = sbr.rel (0) target = $region57
    $region56: #{tpu_custom_call.1} parent=1 // pred_region
      _
    $region57: #{tpu_custom_call.1} parent=1 // pred_fallthru
      _
    // Predicated region
    $region58: #{tpu_custom_call.1} parent=1 // pred_check
      _
    $region59: #{tpu_custom_call.1} parent=1 // pred_check_branch
      %120 = sbr.rel (0) target = $region61
    $region60: #{tpu_custom_call.1} parent=1 // pred_region
      %s122 = ssub.s32 512, 512
      %123 = vsyncadd [#allocation15], %s122
      %s124 = sshll.u32 [#allocation14], 4
      %s125 = int_to_ptr.vmem [resolvable:$true] %s124
      %130 = dma.hbm_to_vmem [thread:$0]  %s14, 512, %s125, [#allocation15], 128, 128, 8
    $region61: #{tpu_custom_call.1} parent=1 // pred_fallthru
      _
    // Predicated region
    $region62: #{tpu_custom_call.1} parent=1 // pred_check
      _
    $region63: #{tpu_custom_call.1} parent=1 // pred_check_branch
      %132 = sbr.rel (0) target = $region65
    $region64: #{tpu_custom_call.1} parent=1 // pred_region
      _
    $region65: #{tpu_custom_call.1} parent=1 // pred_fallthru
      _
    // Predicated region
    $region66: #{tpu_custom_call.1} parent=1 // pred_check
      _
    $region67: #{tpu_custom_call.1} parent=1 // pred_check_branch
      %134 = sbr.rel (0) target = $region69
    $region68: #{tpu_custom_call.1} parent=1 // pred_region
      _
    $region69: #{tpu_custom_call.1} parent=1 // pred_fallthru
      _
    // Predicated region
    $region70: #{tpu_custom_call.1} parent=1 // pred_check
      _
    $region71: #{tpu_custom_call.1} parent=1 // pred_check_branch
      %136 = sbr.rel (0) target = $region73
    $region72: #{tpu_custom_call.1} parent=1 // pred_region
      _
    $region73: #{tpu_custom_call.1} parent=1 // pred_fallthru
      _
    // Predicated region
    $region74: #{tpu_custom_call.1} parent=1 // pred_check
      _
    $region75: #{tpu_custom_call.1} parent=1 // pred_check_branch
      %138 = sbr.rel (0) target = $region77
    $region76: #{tpu_custom_call.1} parent=1 // pred_region
      %139 = dma.done [#allocation3], 128
    $region77: #{tpu_custom_call.1} parent=1 // pred_fallthru
      _
    // Predicated region
    $region78: #{tpu_custom_call.1} parent=1 // pred_check
      _
    $region79: #{tpu_custom_call.1} parent=1 // pred_check_branch
      %141 = sbr.rel (0) target = $region81
    $region80: #{tpu_custom_call.1} parent=1 // pred_region
      %142 = dma.done [#allocation6], 128
    $region81: #{tpu_custom_call.1} parent=1 // pred_fallthru
      _
    // Predicated region
    $region82: #{tpu_custom_call.1} parent=1 // pred_check
      _
    $region83: #{tpu_custom_call.1} parent=1 // pred_check_branch
      %144 = sbr.rel (0) target = $region85
    $region84: #{tpu_custom_call.1} parent=1 // pred_region
      %145 = dma.done [#allocation6], 64
    $region85: #{tpu_custom_call.1} parent=1 // pred_fallthru
      _
    // Predicated region
    $region86: #{tpu_custom_call.1} parent=1 // pred_check
      _
    $region87: #{tpu_custom_call.1} parent=1 // pred_check_branch
      %147 = sbr.rel (0) target = $region89
    $region88: #{tpu_custom_call.1} parent=1 // pred_region
      %148 = dma.done [#allocation9], 128
    $region89: #{tpu_custom_call.1} parent=1 // pred_fallthru
      _
    // Predicated region
    $region90: #{tpu_custom_call.1} parent=1 // pred_check
      _
    $region91: #{tpu_custom_call.1} parent=1 // pred_check_branch
      %150 = sbr.rel (0) target = $region93
    $region92: #{tpu_custom_call.1} parent=1 // pred_region
      %151 = dma.done [#allocation9], 512
    $region93: #{tpu_custom_call.1} parent=1 // pred_fallthru
      _
    // Predicated region
    $region94: #{tpu_custom_call.1} parent=1 // pred_check
      _
    $region95: #{tpu_custom_call.1} parent=1 // pred_check_branch
      %153 = sbr.rel (0) target = $region97
    $region96: #{tpu_custom_call.1} parent=1 // pred_region
      %154 = dma.done [#allocation12], 256
    $region97: #{tpu_custom_call.1} parent=1 // pred_fallthru
      _
    // Predicated region
    $region98: #{tpu_custom_call.1} parent=1 // pred_check
      _
    $region99: #{tpu_custom_call.1} parent=1 // pred_check_branch
      %156 = sbr.rel (0) target = $region101
    $region100: #{tpu_custom_call.1} parent=1 // pred_region
      %157 = dma.done [#allocation12], 512
    $region101: #{tpu_custom_call.1} parent=1 // pred_fallthru
      _
    // Predicated region
    $region102: #{tpu_custom_call.1} parent=1 // pred_check
      _
    $region103: #{tpu_custom_call.1} parent=1 // pred_check_branch
      %159 = sbr.rel (0) target = $region105
    $region104: #{tpu_custom_call.1} parent=1 // pred_region
      %160 = dma.done [#allocation15], 512
    $region105: #{tpu_custom_call.1} parent=1 // pred_fallthru
      _
    %v161 = vld [vmem:[#allocation2] sm:$0xff]
    %v162 = vld [vmem:[#allocation7] sm:$0xf]
    %vm163 = vcmask 261120
    %v164 = vsel %vm163, %v161, 0.0
    %v165 = vrot.slane %v164, 4
    %v166 = vadd.f32 %v164, %v165
    %v167 = vrot.slane %v166, 2
    %v168 = vadd.f32 %v166, %v167
    %v169 = vrot.slane %v168, 1
    %v170 = vadd.f32 %v168, %v169
    %v172 = vsel %vm163, %v170, 0
    %v175 = vsel %vm163, %v162, 0
    %177 = vmatprep.subr.mxu0 0.0
    %178 = vmatpush1.xpose.msra.mxu0 0.0
    %179 = vmatprep.subr.mxu0 0.0
    %180 = vmatpush1.xpose.msra.mxu0 0.0
    %181 = vmatprep.subr.mxu0 0.0
    %182 = vmatpush1.xpose.msra.mxu0 0.0
    %183 = vmatprep.subr.mxu0 0.0
    %184 = vmatpush1.xpose.msra.mxu0 0.0
    %185 = vmatprep.subr.mxu0 0.0
    %186 = vmatpush1.xpose.msra.mxu0 0.0
    %187 = vmatprep.subr.mxu0 0.0
    %188 = vmatpush1.xpose.msra.mxu0 0.0
    %189 = vmatprep.subr.mxu0 0.0
    %190 = vmatpush1.xpose.msra.mxu0 0.0
    %191 = vmatprep.subr.mxu0 0.0
    %192 = vmatpush1.xpose.msra.mxu0 0.0
    %193 = vmatprep.subr.mxu0 0.0
    %194 = vmatpush1.xpose.msra.mxu0 0.0
    %195 = vmatprep.subr.mxu0 0.0
    %196 = vmatpush1.xpose.msra.mxu0 0.0
    %197 = vmatprep.subr.mxu0 0.0
    %198 = vmatpush1.xpose.msra.mxu0 0.0
    %199 = vmatprep.subr.mxu0 0.0
    %200 = vmatpush1.xpose.msra.mxu0 0.0
    %201 = vmatprep.subr.mxu0 0.0
    %202 = vmatpush1.xpose.msra.mxu0 0.0
    %203 = vmatprep.subr.mxu0 0.0
    %204 = vmatpush1.xpose.msra.mxu0 0.0
    %205 = vmatprep.subr.mxu0 0.0
    %206 = vmatpush1.xpose.msra.mxu0 0.0
    %207 = vmatprep.subr.mxu0 0.0
    %208 = vmatpush1.xpose.msra.mxu0 %v175
    %209 = vmatprep.subr.mxu0 0.0
    %210 = vmatpush2.xpose.msra.mxu0 0.0
    %211 = vmatprep.subr.mxu0 0.0
    %212 = vmatpush2.xpose.msra.mxu0 0.0
    %213 = vmatprep.subr.mxu0 0.0
    %214 = vmatpush2.xpose.msra.mxu0 0.0
    %215 = vmatprep.subr.mxu0 0.0
    %216 = vmatpush2.xpose.msra.mxu0 0.0
    %217 = vmatprep.subr.mxu0 0.0
    %218 = vmatpush2.xpose.msra.mxu0 0.0
    %219 = vmatprep.subr.mxu0 0.0
    %220 = vmatpush2.xpose.msra.mxu0 0.0
    %221 = vmatprep.subr.mxu0 0.0
    %222 = vmatpush2.xpose.msra.mxu0 0.0
    %223 = vmatprep.subr.mxu0 0.0
    %224 = vmatpush2.xpose.msra.mxu0 0.0
    %225 = vmatprep.subr.mxu0 0.0
    %226 = vmatpush2.xpose.msra.mxu0 0.0
    %227 = vmatprep.subr.mxu0 0.0
    %228 = vmatpush2.xpose.msra.mxu0 0.0
    %229 = vmatprep.subr.mxu0 0.0
    %230 = vmatpush2.xpose.msra.mxu0 0.0
    %231 = vmatprep.subr.mxu0 0.0
    %232 = vmatpush2.xpose.msra.mxu0 0.0
    %233 = vmatprep.subr.mxu0 0.0
    %234 = vmatpush2.xpose.msra.mxu0 0.0
    %235 = vmatprep.subr.mxu0 0.0
    %236 = vmatpush2.xpose.msra.mxu0 0.0
    %237 = vmatprep.subr.mxu0 0.0
    %238 = vmatpush2.xpose.msra.mxu0 0.0
    %239 = vmatprep.subr.mxu0 0.0
    %240 = vmatpush2.xpose.msra.mxu0 0.0
    %241 = vmatprep.mubr.f32.mxu0 0.0
    %242 = vmatmul.mubr.f32.gmra.mxu0 %v172
    %v243 = vpop.f32.mrf.mxu0
    %v244 = vadd.f32 0.0, %v243
    %v245 = vpop.f32.mrf.mxu0
    %246 = vdwg.mxu0
    %v247 = vmul.f32 %v244, 0.015625
    %vm248 = vcmask 31744
    %v250 = vsel %vm248, %v247, 0
    %vm252 = vcmask 1043456
    %v253 = vsel %vm252, %v162, 0
    %255 = vmatprep.subr.mxu0 0.0
    %256 = vmatpush1.msra.mxu0 0.0
    %257 = vmatprep.subr.mxu0 0.0
    %258 = vmatpush1.msra.mxu0 0.0
    %259 = vmatprep.subr.mxu0 0.0
    %260 = vmatpush1.msra.mxu0 0.0
    %261 = vmatprep.subr.mxu0 0.0
    %262 = vmatpush1.msra.mxu0 0.0
    %263 = vmatprep.subr.mxu0 0.0
    %264 = vmatpush1.msra.mxu0 0.0
    %265 = vmatprep.subr.mxu0 0.0
    %266 = vmatpush1.msra.mxu0 0.0
    %267 = vmatprep.subr.mxu0 0.0
    %268 = vmatpush1.msra.mxu0 0.0
    %269 = vmatprep.subr.mxu0 0.0
    %270 = vmatpush1.msra.mxu0 0.0
    %271 = vmatprep.subr.mxu0 0.0
    %272 = vmatpush1.msra.mxu0 0.0
    %273 = vmatprep.subr.mxu0 0.0
    %274 = vmatpush1.msra.mxu0 0.0
    %275 = vmatprep.subr.mxu0 0.0
    %276 = vmatpush1.msra.mxu0 0.0
    %277 = vmatprep.subr.mxu0 0.0
    %278 = vmatpush1.msra.mxu0 0.0
    %279 = vmatprep.subr.mxu0 0.0
    %280 = vmatpush1.msra.mxu0 0.0
    %281 = vmatprep.subr.mxu0 0.0
    %282 = vmatpush1.msra.mxu0 0.0
    %283 = vmatprep.subr.mxu0 0.0
    %284 = vmatpush1.msra.mxu0 0.0
    %285 = vmatprep.subr.mxu0 0.0
    %286 = vmatpush1.msra.mxu0 %v253
    %287 = vmatprep.subr.mxu0 0.0
    %288 = vmatpush2.msra.mxu0 0.0
    %289 = vmatprep.subr.mxu0 0.0
    %290 = vmatpush2.msra.mxu0 0.0
    %291 = vmatprep.subr.mxu0 0.0
    %292 = vmatpush2.msra.mxu0 0.0
    %293 = vmatprep.subr.mxu0 0.0
    %294 = vmatpush2.msra.mxu0 0.0
    %295 = vmatprep.subr.mxu0 0.0
    %296 = vmatpush2.msra.mxu0 0.0
    %297 = vmatprep.subr.mxu0 0.0
    %298 = vmatpush2.msra.mxu0 0.0
    %299 = vmatprep.subr.mxu0 0.0
    %300 = vmatpush2.msra.mxu0 0.0
    %301 = vmatprep.subr.mxu0 0.0
    %302 = vmatpush2.msra.mxu0 0.0
    %303 = vmatprep.subr.mxu0 0.0
    %304 = vmatpush2.msra.mxu0 0.0
    %305 = vmatprep.subr.mxu0 0.0
    %306 = vmatpush2.msra.mxu0 0.0
    %307 = vmatprep.subr.mxu0 0.0
    %308 = vmatpush2.msra.mxu0 0.0
    %309 = vmatprep.subr.mxu0 0.0
    %310 = vmatpush2.msra.mxu0 0.0
    %311 = vmatprep.subr.mxu0 0.0
    %312 = vmatpush2.msra.mxu0 0.0
    %313 = vmatprep.subr.mxu0 0.0
    %314 = vmatpush2.msra.mxu0 0.0
    %315 = vmatprep.subr.mxu0 0.0
    %316 = vmatpush2.msra.mxu0 0.0
    %317 = vmatprep.subr.mxu0 0.0
    %318 = vmatpush2.msra.mxu0 0.0
    %319 = vmatprep.mubr.f32.mxu0 0.0
    %320 = vmatmul.mubr.f32.gmra.mxu0 %v250
    %v321 = vpop.f32.mrf.mxu0
    %v322 = vadd.f32 0.0, %v321
    %v323 = vpop.f32.mrf.mxu0
    %324 = vdwg.mxu0
    %v325 = vlaneseq
    %v326 = vshrl.u32 %v325, 7
    %v327 = vsub.s32 0, %v326
    %v328 = vrot.slane %v322, %v327
    %v329 = vsub.f32 %v161, %v328
    %v330 = vmul.f32 %v329, %v329
    %v331 = vsel %vm163, %v330, 0.0
    %v332 = vrot.slane %v331, 4
    %v333 = vadd.f32 %v331, %v332
    %v334 = vrot.slane %v333, 2
    %v335 = vadd.f32 %v333, %v334
    %v336 = vrot.slane %v335, 1
    %v337 = vadd.f32 %v335, %v336
    %v339 = vsel %vm163, %v337, 0
    %341 = vmatprep.subr.mxu0 0.0
    %342 = vmatpush1.xpose.msra.mxu0 0.0
    %343 = vmatprep.subr.mxu0 0.0
    %344 = vmatpush1.xpose.msra.mxu0 0.0
    %345 = vmatprep.subr.mxu0 0.0
    %346 = vmatpush1.xpose.msra.mxu0 0.0
    %347 = vmatprep.subr.mxu0 0.0
    %348 = vmatpush1.xpose.msra.mxu0 0.0
    %349 = vmatprep.subr.mxu0 0.0
    %350 = vmatpush1.xpose.msra.mxu0 0.0
    %351 = vmatprep.subr.mxu0 0.0
    %352 = vmatpush1.xpose.msra.mxu0 0.0
    %353 = vmatprep.subr.mxu0 0.0
    %354 = vmatpush1.xpose.msra.mxu0 0.0
    %355 = vmatprep.subr.mxu0 0.0
    %356 = vmatpush1.xpose.msra.mxu0 0.0
    %357 = vmatprep.subr.mxu0 0.0
    %358 = vmatpush1.xpose.msra.mxu0 0.0
    %359 = vmatprep.subr.mxu0 0.0
    %360 = vmatpush1.xpose.msra.mxu0 0.0
    %361 = vmatprep.subr.mxu0 0.0
    %362 = vmatpush1.xpose.msra.mxu0 0.0
    %363 = vmatprep.subr.mxu0 0.0
    %364 = vmatpush1.xpose.msra.mxu0 0.0
    %365 = vmatprep.subr.mxu0 0.0
    %366 = vmatpush1.xpose.msra.mxu0 0.0
    %367 = vmatprep.subr.mxu0 0.0
    %368 = vmatpush1.xpose.msra.mxu0 0.0
    %369 = vmatprep.subr.mxu0 0.0
    %370 = vmatpush1.xpose.msra.mxu0 0.0
    %371 = vmatprep.subr.mxu0 0.0
    %372 = vmatpush1.xpose.msra.mxu0 %v175
    %373 = vmatprep.subr.mxu0 0.0
    %374 = vmatpush2.xpose.msra.mxu0 0.0
    %375 = vmatprep.subr.mxu0 0.0
    %376 = vmatpush2.xpose.msra.mxu0 0.0
    %377 = vmatprep.subr.mxu0 0.0
    %378 = vmatpush2.xpose.msra.mxu0 0.0
    %379 = vmatprep.subr.mxu0 0.0
    %380 = vmatpush2.xpose.msra.mxu0 0.0
    %381 = vmatprep.subr.mxu0 0.0
    %382 = vmatpush2.xpose.msra.mxu0 0.0
    %383 = vmatprep.subr.mxu0 0.0
    %384 = vmatpush2.xpose.msra.mxu0 0.0
    %385 = vmatprep.subr.mxu0 0.0
    %386 = vmatpush2.xpose.msra.mxu0 0.0
    %387 = vmatprep.subr.mxu0 0.0
    %388 = vmatpush2.xpose.msra.mxu0 0.0
    %389 = vmatprep.subr.mxu0 0.0
    %390 = vmatpush2.xpose.msra.mxu0 0.0
    %391 = vmatprep.subr.mxu0 0.0
    %392 = vmatpush2.xpose.msra.mxu0 0.0
    %393 = vmatprep.subr.mxu0 0.0
    %394 = vmatpush2.xpose.msra.mxu0 0.0
    %395 = vmatprep.subr.mxu0 0.0
    %396 = vmatpush2.xpose.msra.mxu0 0.0
    %397 = vmatprep.subr.mxu0 0.0
    %398 = vmatpush2.xpose.msra.mxu0 0.0
    %399 = vmatprep.subr.mxu0 0.0
    %400 = vmatpush2.xpose.msra.mxu0 0.0
    %401 = vmatprep.subr.mxu0 0.0
    %402 = vmatpush2.xpose.msra.mxu0 0.0
    %403 = vmatprep.subr.mxu0 0.0
    %404 = vmatpush2.xpose.msra.mxu0 0.0
    %405 = vmatprep.mubr.f32.mxu0 0.0
    %406 = vmatmul.mubr.f32.gmra.mxu0 %v339
    %v407 = vpop.f32.mrf.mxu0
    %v408 = vadd.f32 0.0, %v407
    %v409 = vpop.f32.mrf.mxu0
    %410 = vdwg.mxu0
    %v411 = vmul.f32 %v408, 0.015625
    %v412 = vadd.f32 %v411, 1e-05
    %v413 = vrsqrt.pop %v412
    %v415 = vsel %vm248, %v413, 0
    %417 = vmatprep.subr.mxu0 0.0
    %418 = vmatpush1.msra.mxu0 0.0
    %419 = vmatprep.subr.mxu0 0.0
    %420 = vmatpush1.msra.mxu0 0.0
    %421 = vmatprep.subr.mxu0 0.0
    %422 = vmatpush1.msra.mxu0 0.0
    %423 = vmatprep.subr.mxu0 0.0
    %424 = vmatpush1.msra.mxu0 0.0
    %425 = vmatprep.subr.mxu0 0.0
    %426 = vmatpush1.msra.mxu0 0.0
    %427 = vmatprep.subr.mxu0 0.0
    %428 = vmatpush1.msra.mxu0 0.0
    %429 = vmatprep.subr.mxu0 0.0
    %430 = vmatpush1.msra.mxu0 0.0
    %431 = vmatprep.subr.mxu0 0.0
    %432 = vmatpush1.msra.mxu0 0.0
    %433 = vmatprep.subr.mxu0 0.0
    %434 = vmatpush1.msra.mxu0 0.0
    %435 = vmatprep.subr.mxu0 0.0
    %436 = vmatpush1.msra.mxu0 0.0
    %437 = vmatprep.subr.mxu0 0.0
    %438 = vmatpush1.msra.mxu0 0.0
    %439 = vmatprep.subr.mxu0 0.0
    %440 = vmatpush1.msra.mxu0 0.0
    %441 = vmatprep.subr.mxu0 0.0
    %442 = vmatpush1.msra.mxu0 0.0
    %443 = vmatprep.subr.mxu0 0.0
    %444 = vmatpush1.msra.mxu0 0.0
    %445 = vmatprep.subr.mxu0 0.0
    %446 = vmatpush1.msra.mxu0 0.0
    %447 = vmatprep.subr.mxu0 0.0
    %448 = vmatpush1.msra.mxu0 %v253
    %449 = vmatprep.subr.mxu0 0.0
    %450 = vmatpush2.msra.mxu0 0.0
    %451 = vmatprep.subr.mxu0 0.0
    %452 = vmatpush2.msra.mxu0 0.0
    %453 = vmatprep.subr.mxu0 0.0
    %454 = vmatpush2.msra.mxu0 0.0
    %455 = vmatprep.subr.mxu0 0.0
    %456 = vmatpush2.msra.mxu0 0.0
    %457 = vmatprep.subr.mxu0 0.0
    %458 = vmatpush2.msra.mxu0 0.0
    %459 = vmatprep.subr.mxu0 0.0
    %460 = vmatpush2.msra.mxu0 0.0
    %461 = vmatprep.subr.mxu0 0.0
    %462 = vmatpush2.msra.mxu0 0.0
    %463 = vmatprep.subr.mxu0 0.0
    %464 = vmatpush2.msra.mxu0 0.0
    %465 = vmatprep.subr.mxu0 0.0
    %466 = vmatpush2.msra.mxu0 0.0
    %467 = vmatprep.subr.mxu0 0.0
    %468 = vmatpush2.msra.mxu0 0.0
    %469 = vmatprep.subr.mxu0 0.0
    %470 = vmatpush2.msra.mxu0 0.0
    %471 = vmatprep.subr.mxu0 0.0
    %472 = vmatpush2.msra.mxu0 0.0
    %473 = vmatprep.subr.mxu0 0.0
    %474 = vmatpush2.msra.mxu0 0.0
    %475 = vmatprep.subr.mxu0 0.0
    %476 = vmatpush2.msra.mxu0 0.0
    %477 = vmatprep.subr.mxu0 0.0
    %478 = vmatpush2.msra.mxu0 0.0
    %479 = vmatprep.subr.mxu0 0.0
    %480 = vmatpush2.msra.mxu0 0.0
    %481 = vmatprep.mubr.f32.mxu0 0.0
    %482 = vmatmul.mubr.f32.gmra.mxu0 %v415
    %v483 = vpop.f32.mrf.mxu0
    %v484 = vadd.f32 0.0, %v483
    %v485 = vpop.f32.mrf.mxu0
    %486 = vdwg.mxu0
    %v487 = vlaneseq
    %v488 = vshrl.u32 %v487, 7
    %v489 = vsub.s32 0, %v488
    %v490 = vrot.slane %v484, %v489
    %v491 = vmul.f32 %v329, %v490
    %v492 = vld [vmem:[#allocation5] sm:$0xff]
    %v493 = vld [vmem:[%s5] sm:$0x1]
    %v495 = vlaneseq
    %v496 = vshrl.u32 %v495, 7
    %v497 = vsub.s32 0, %v496
    %v498 = vrot.slane %v493, %v497
    %v500 = vmul.f32 %v491, %v498
    %v501 = vld [vmem:[%s6] sm:$0x1]
    %v503 = vlaneseq
    %v504 = vshrl.u32 %v503, 7
    %v505 = vsub.s32 0, %v504
    %v506 = vrot.slane %v501, %v505
    %v508 = vadd.f32 %v500, %v506
    %v509 = vld [vmem:[#allocation10] sm:$0xff]
    %v510 = vld [vmem:[#allocation10 + $0x8] sm:$0xff]
    %v511 = vld [vmem:[#allocation10 + $0x10] sm:$0xff]
    %v512 = vld [vmem:[#allocation10 + $0x18] sm:$0xff]
    %v514 = vsel %vm163, %v508, 0
    %516 = vmatprep.subr.mxu0 0.0
    %517 = vmatpush1.msra.mxu0 0.0
    %518 = vmatprep.subr.mxu0 0.0
    %519 = vmatpush1.msra.mxu0 0.0
    %520 = vmatprep.subr.mxu0 0.0
    %521 = vmatpush1.msra.mxu0 0.0
    %522 = vmatprep.subr.mxu0 0.0
    %523 = vmatpush1.msra.mxu0 0.0
    %524 = vmatprep.subr.mxu0 0.0
    %525 = vmatpush1.msra.mxu0 0.0
    %526 = vmatprep.subr.mxu0 0.0
    %527 = vmatpush1.msra.mxu0 0.0
    %528 = vmatprep.subr.mxu0 0.0
    %529 = vmatpush1.msra.mxu0 0.0
    %530 = vmatprep.subr.mxu0 0.0
    %531 = vmatpush1.msra.mxu0 0.0
    %532 = vmatprep.subr.mxu0 0.0
    %533 = vmatpush1.msra.mxu0 0.0
    %534 = vmatprep.subr.mxu0 0.0
    %535 = vmatpush1.msra.mxu0 0.0
    %536 = vmatprep.subr.mxu0 0.0
    %537 = vmatpush1.msra.mxu0 0.0
    %538 = vmatprep.subr.mxu0 0.0
    %539 = vmatpush1.msra.mxu0 0.0
    %540 = vmatprep.subr.mxu0 0.0
    %541 = vmatpush1.msra.mxu0 %v512
    %542 = vmatprep.subr.mxu0 0.0
    %543 = vmatpush1.msra.mxu0 %v511
    %544 = vmatprep.subr.mxu0 0.0
    %545 = vmatpush1.msra.mxu0 %v510
    %546 = vmatprep.subr.mxu0 0.0
    %547 = vmatpush1.msra.mxu0 %v509
    %548 = vmatprep.subr.mxu0 0.0
    %549 = vmatpush2.msra.mxu0 0.0
    %550 = vmatprep.subr.mxu0 0.0
    %551 = vmatpush2.msra.mxu0 0.0
    %552 = vmatprep.subr.mxu0 0.0
    %553 = vmatpush2.msra.mxu0 0.0
    %554 = vmatprep.subr.mxu0 0.0
    %555 = vmatpush2.msra.mxu0 0.0
    %556 = vmatprep.subr.mxu0 0.0
    %557 = vmatpush2.msra.mxu0 0.0
    %558 = vmatprep.subr.mxu0 0.0
    %559 = vmatpush2.msra.mxu0 0.0
    %560 = vmatprep.subr.mxu0 0.0
    %561 = vmatpush2.msra.mxu0 0.0
    %562 = vmatprep.subr.mxu0 0.0
    %563 = vmatpush2.msra.mxu0 0.0
    %564 = vmatprep.subr.mxu0 0.0
    %565 = vmatpush2.msra.mxu0 0.0
    %566 = vmatprep.subr.mxu0 0.0
    %567 = vmatpush2.msra.mxu0 0.0
    %568 = vmatprep.subr.mxu0 0.0
    %569 = vmatpush2.msra.mxu0 0.0
    %570 = vmatprep.subr.mxu0 0.0
    %571 = vmatpush2.msra.mxu0 0.0
    %572 = vmatprep.subr.mxu0 0.0
    %573 = vmatpush2.msra.mxu0 0.0
    %574 = vmatprep.subr.mxu0 0.0
    %575 = vmatpush2.msra.mxu0 0.0
    %576 = vmatprep.subr.mxu0 0.0
    %577 = vmatpush2.msra.mxu0 0.0
    %578 = vmatprep.subr.mxu0 0.0
    %579 = vmatpush2.msra.mxu0 0.0
    %580 = vmatprep.mubr.f32.mxu0 0.0
    %581 = vmatmul.mubr.f32.gmra.mxu0 %v514
    %v582 = vpop.f32.mrf.mxu0
    %v583 = vadd.f32 0.0, %v582
    %v584 = vpop.f32.mrf.mxu0
    %585 = vdwg.mxu0
    %vm586 = vcmask 523264
    %v588 = vsel %vm586, %v583, 0
    %590 = vmatprep.subr.mxu0 0.0
    %591 = vmatpush1.xpose.msra.mxu0 0.0
    %592 = vmatprep.subr.mxu0 0.0
    %593 = vmatpush1.xpose.msra.mxu0 0.0
    %594 = vmatprep.subr.mxu0 0.0
    %595 = vmatpush1.xpose.msra.mxu0 0.0
    %596 = vmatprep.subr.mxu0 0.0
    %597 = vmatpush1.xpose.msra.mxu0 0.0
    %598 = vmatprep.subr.mxu0 0.0
    %599 = vmatpush1.xpose.msra.mxu0 0.0
    %600 = vmatprep.subr.mxu0 0.0
    %601 = vmatpush1.xpose.msra.mxu0 0.0
    %602 = vmatprep.subr.mxu0 0.0
    %603 = vmatpush1.xpose.msra.mxu0 0.0
    %604 = vmatprep.subr.mxu0 0.0
    %605 = vmatpush1.xpose.msra.mxu0 0.0
    %606 = vmatprep.subr.mxu0 0.0
    %607 = vmatpush1.xpose.msra.mxu0 0.0
    %608 = vmatprep.subr.mxu0 0.0
    %609 = vmatpush1.xpose.msra.mxu0 0.0
    %610 = vmatprep.subr.mxu0 0.0
    %611 = vmatpush1.xpose.msra.mxu0 0.0
    %612 = vmatprep.subr.mxu0 0.0
    %613 = vmatpush1.xpose.msra.mxu0 0.0
    %614 = vmatprep.subr.mxu0 0.0
    %615 = vmatpush1.xpose.msra.mxu0 0.0
    %616 = vmatprep.subr.mxu0 0.0
    %617 = vmatpush1.xpose.msra.mxu0 0.0
    %618 = vmatprep.subr.mxu0 0.0
    %619 = vmatpush1.xpose.msra.mxu0 0.0
    %620 = vmatprep.subr.mxu0 0.0
    %621 = vmatpush1.xpose.msra.mxu0 %v588
    %622 = vmatprep.subr.mxu0 0.0
    %623 = vmatpush2.xpose.msra.mxu0 0.0
    %624 = vmatprep.subr.mxu0 0.0
    %625 = vmatpush2.xpose.msra.mxu0 0.0
    %626 = vmatprep.subr.mxu0 0.0
    %627 = vmatpush2.xpose.msra.mxu0 0.0
    %628 = vmatprep.subr.mxu0 0.0
    %629 = vmatpush2.xpose.msra.mxu0 0.0
    %630 = vmatprep.subr.mxu0 0.0
    %631 = vmatpush2.xpose.msra.mxu0 0.0
    %632 = vmatprep.subr.mxu0 0.0
    %633 = vmatpush2.xpose.msra.mxu0 0.0
    %634 = vmatprep.subr.mxu0 0.0
    %635 = vmatpush2.xpose.msra.mxu0 0.0
    %636 = vmatprep.subr.mxu0 0.0
    %637 = vmatpush2.xpose.msra.mxu0 0.0
    %638 = vmatprep.subr.mxu0 0.0
    %639 = vmatpush2.xpose.msra.mxu0 0.0
    %640 = vmatprep.subr.mxu0 0.0
    %641 = vmatpush2.xpose.msra.mxu0 0.0
    %642 = vmatprep.subr.mxu0 0.0
    %643 = vmatpush2.xpose.msra.mxu0 0.0
    %644 = vmatprep.subr.mxu0 0.0
    %645 = vmatpush2.xpose.msra.mxu0 0.0
    %646 = vmatprep.subr.mxu0 0.0
    %647 = vmatpush2.xpose.msra.mxu0 0.0
    %648 = vmatprep.subr.mxu0 0.0
    %649 = vmatpush2.xpose.msra.mxu0 0.0
    %650 = vmatprep.subr.mxu0 0.0
    %651 = vmatpush2.xpose.msra.mxu0 0.0
    %652 = vmatprep.subr.mxu0 0.0
    %653 = vmatpush2.xpose.msra.mxu0 0.0
    %654 = vmatprep.mubr.f32.mxu0 0.0
    %655 = vmatmul.mubr.f32.gmra.mxu0 %v588
    %v656 = vpop.f32.mrf.mxu0
    %v657 = vadd.f32 0.0, %v656
    %v658 = vpop.f32.mrf.mxu0
    %659 = vdwg.mxu0
    %vm660 = vcmask 64512
    %v661 = vsel %vm660, %v657, -inf
    %662 = vmax.xlane.f32.xlu0 %v661
    %v663 = vpop.xlane.xlu0 %662
    %v664 = vsub.f32 %v657, %v663
    %v665 = vmul.f32 %v664, 1.442695
    %v666 = vpow.pop %v665
    %v667 = vsel %vm660, %v666, 0.0
    %668 = vadd.xlane.f32.xlu0 %v667
    %v669 = vpop.xlane.xlu0 %668
    %v670 = vrcp.pop %v669
    %v671 = vmul.f32 %v666, %v670
    %v672 = vld [vmem:[#allocation8] sm:$0xff]
    %v674 = vsel %vm163, %v672, 0
    %676 = vmatprep.subr.mxu0 0.0
    %677 = vmatpush1.xpose.msra.mxu0 0.0
    %678 = vmatprep.subr.mxu0 0.0
    %679 = vmatpush1.xpose.msra.mxu0 0.0
    %680 = vmatprep.subr.mxu0 0.0
    %681 = vmatpush1.xpose.msra.mxu0 0.0
    %682 = vmatprep.subr.mxu0 0.0
    %683 = vmatpush1.xpose.msra.mxu0 0.0
    %684 = vmatprep.subr.mxu0 0.0
    %685 = vmatpush1.xpose.msra.mxu0 0.0
    %686 = vmatprep.subr.mxu0 0.0
    %687 = vmatpush1.xpose.msra.mxu0 0.0
    %688 = vmatprep.subr.mxu0 0.0
    %689 = vmatpush1.xpose.msra.mxu0 0.0
    %690 = vmatprep.subr.mxu0 0.0
    %691 = vmatpush1.xpose.msra.mxu0 0.0
    %692 = vmatprep.subr.mxu0 0.0
    %693 = vmatpush1.xpose.msra.mxu0 0.0
    %694 = vmatprep.subr.mxu0 0.0
    %695 = vmatpush1.xpose.msra.mxu0 0.0
    %696 = vmatprep.subr.mxu0 0.0
    %697 = vmatpush1.xpose.msra.mxu0 0.0
    %698 = vmatprep.subr.mxu0 0.0
    %699 = vmatpush1.xpose.msra.mxu0 0.0
    %700 = vmatprep.subr.mxu0 0.0
    %701 = vmatpush1.xpose.msra.mxu0 0.0
    %702 = vmatprep.subr.mxu0 0.0
    %703 = vmatpush1.xpose.msra.mxu0 0.0
    %704 = vmatprep.subr.mxu0 0.0
    %705 = vmatpush1.xpose.msra.mxu0 0.0
    %706 = vmatprep.subr.mxu0 0.0
    %707 = vmatpush1.xpose.msra.mxu0 %v514
    %708 = vmatprep.subr.mxu0 0.0
    %709 = vmatpush2.xpose.msra.mxu0 0.0
    %710 = vmatprep.subr.mxu0 0.0
    %711 = vmatpush2.xpose.msra.mxu0 0.0
    %712 = vmatprep.subr.mxu0 0.0
    %713 = vmatpush2.xpose.msra.mxu0 0.0
    %714 = vmatprep.subr.mxu0 0.0
    %715 = vmatpush2.xpose.msra.mxu0 0.0
    %716 = vmatprep.subr.mxu0 0.0
    %717 = vmatpush2.xpose.msra.mxu0 0.0
    %718 = vmatprep.subr.mxu0 0.0
    %719 = vmatpush2.xpose.msra.mxu0 0.0
    %720 = vmatprep.subr.mxu0 0.0
    %721 = vmatpush2.xpose.msra.mxu0 0.0
    %722 = vmatprep.subr.mxu0 0.0
    %723 = vmatpush2.xpose.msra.mxu0 0.0
    %724 = vmatprep.subr.mxu0 0.0
    %725 = vmatpush2.xpose.msra.mxu0 0.0
    %726 = vmatprep.subr.mxu0 0.0
    %727 = vmatpush2.xpose.msra.mxu0 0.0
    %728 = vmatprep.subr.mxu0 0.0
    %729 = vmatpush2.xpose.msra.mxu0 0.0
    %730 = vmatprep.subr.mxu0 0.0
    %731 = vmatpush2.xpose.msra.mxu0 0.0
    %732 = vmatprep.subr.mxu0 0.0
    %733 = vmatpush2.xpose.msra.mxu0 0.0
    %734 = vmatprep.subr.mxu0 0.0
    %735 = vmatpush2.xpose.msra.mxu0 0.0
    %736 = vmatprep.subr.mxu0 0.0
    %737 = vmatpush2.xpose.msra.mxu0 0.0
    %738 = vmatprep.subr.mxu0 0.0
    %739 = vmatpush2.xpose.msra.mxu0 0.0
    %740 = vmatprep.mubr.f32.mxu0 0.0
    %741 = vmatmul.mubr.f32.gmra.mxu0 %v674
    %v742 = vpop.f32.mrf.mxu0
    %v743 = vadd.f32 0.0, %v742
    %v744 = vpop.f32.mrf.mxu0
    %745 = vdwg.mxu0
    %v746 = vmul.f32 %v743, %v671
    %v748 = vsel %vm660, %v746, 0
    %750 = vmatprep.subr.mxu0 0.0
    %751 = vmatpush1.msra.mxu0 0.0
    %752 = vmatprep.subr.mxu0 0.0
    %753 = vmatpush1.msra.mxu0 0.0
    %754 = vmatprep.subr.mxu0 0.0
    %755 = vmatpush1.msra.mxu0 0.0
    %756 = vmatprep.subr.mxu0 0.0
    %757 = vmatpush1.msra.mxu0 0.0
    %758 = vmatprep.subr.mxu0 0.0
    %759 = vmatpush1.msra.mxu0 0.0
    %760 = vmatprep.subr.mxu0 0.0
    %761 = vmatpush1.msra.mxu0 0.0
    %762 = vmatprep.subr.mxu0 0.0
    %763 = vmatpush1.msra.mxu0 0.0
    %764 = vmatprep.subr.mxu0 0.0
    %765 = vmatpush1.msra.mxu0 0.0
    %766 = vmatprep.subr.mxu0 0.0
    %767 = vmatpush1.msra.mxu0 0.0
    %768 = vmatprep.subr.mxu0 0.0
    %769 = vmatpush1.msra.mxu0 0.0
    %770 = vmatprep.subr.mxu0 0.0
    %771 = vmatpush1.msra.mxu0 0.0
    %772 = vmatprep.subr.mxu0 0.0
    %773 = vmatpush1.msra.mxu0 0.0
    %774 = vmatprep.subr.mxu0 0.0
    %775 = vmatpush1.msra.mxu0 0.0
    %776 = vmatprep.subr.mxu0 0.0
    %777 = vmatpush1.msra.mxu0 0.0
    %778 = vmatprep.subr.mxu0 0.0
    %779 = vmatpush1.msra.mxu0 0.0
    %780 = vmatprep.subr.mxu0 0.0
    %781 = vmatpush1.msra.mxu0 %v492
    %782 = vmatprep.subr.mxu0 0.0
    %783 = vmatpush2.msra.mxu0 0.0
    %784 = vmatprep.subr.mxu0 0.0
    %785 = vmatpush2.msra.mxu0 0.0
    %786 = vmatprep.subr.mxu0 0.0
    %787 = vmatpush2.msra.mxu0 0.0
    %788 = vmatprep.subr.mxu0 0.0
    %789 = vmatpush2.msra.mxu0 0.0
    %790 = vmatprep.subr.mxu0 0.0
    %791 = vmatpush2.msra.mxu0 0.0
    %792 = vmatprep.subr.mxu0 0.0
    %793 = vmatpush2.msra.mxu0 0.0
    %794 = vmatprep.subr.mxu0 0.0
    %795 = vmatpush2.msra.mxu0 0.0
    %796 = vmatprep.subr.mxu0 0.0
    %797 = vmatpush2.msra.mxu0 0.0
    %798 = vmatprep.subr.mxu0 0.0
    %799 = vmatpush2.msra.mxu0 0.0
    %800 = vmatprep.subr.mxu0 0.0
    %801 = vmatpush2.msra.mxu0 0.0
    %802 = vmatprep.subr.mxu0 0.0
    %803 = vmatpush2.msra.mxu0 0.0
    %804 = vmatprep.subr.mxu0 0.0
    %805 = vmatpush2.msra.mxu0 0.0
    %806 = vmatprep.subr.mxu0 0.0
    %807 = vmatpush2.msra.mxu0 0.0
    %808 = vmatprep.subr.mxu0 0.0
    %809 = vmatpush2.msra.mxu0 0.0
    %810 = vmatprep.subr.mxu0 0.0
    %811 = vmatpush2.msra.mxu0 0.0
    %812 = vmatprep.subr.mxu0 0.0
    %813 = vmatpush2.msra.mxu0 0.0
    %814 = vmatprep.mubr.f32.mxu0 0.0
    %815 = vmatmul.mubr.f32.gmra.mxu0 %v748
    %v816 = vpop.f32.mrf.mxu0
    %v817 = vadd.f32 0.0, %v816
    %v818 = vpop.f32.mrf.mxu0
    %819 = vdwg.mxu0
    %v820 = vld [vmem:[#allocation11] sm:$0xff]
    %v821 = vld [vmem:[#allocation11 + $0x8] sm:$0xff]
    %v822 = vld [vmem:[%s8] sm:$0x1]
    %v824 = vlaneseq
    %v825 = vshrl.u32 %v824, 7
    %v826 = vsub.s32 0, %v825
    %v827 = vrot.slane %v822, %v826
    %vm829 = vcmask 130048
    %v831 = vsel %vm829, %v817, 0
    %833 = vmatprep.subr.mxu0 0.0
    %834 = vmatpush1.msra.mxu0 0.0
    %835 = vmatprep.subr.mxu0 0.0
    %836 = vmatpush1.msra.mxu0 0.0
    %837 = vmatprep.subr.mxu0 0.0
    %838 = vmatpush1.msra.mxu0 0.0
    %839 = vmatprep.subr.mxu0 0.0
    %840 = vmatpush1.msra.mxu0 0.0
    %841 = vmatprep.subr.mxu0 0.0
    %842 = vmatpush1.msra.mxu0 0.0
    %843 = vmatprep.subr.mxu0 0.0
    %844 = vmatpush1.msra.mxu0 0.0
    %845 = vmatprep.subr.mxu0 0.0
    %846 = vmatpush1.msra.mxu0 0.0
    %847 = vmatprep.subr.mxu0 0.0
    %848 = vmatpush1.msra.mxu0 0.0
    %849 = vmatprep.subr.mxu0 0.0
    %850 = vmatpush1.msra.mxu0 0.0
    %851 = vmatprep.subr.mxu0 0.0
    %852 = vmatpush1.msra.mxu0 0.0
    %853 = vmatprep.subr.mxu0 0.0
    %854 = vmatpush1.msra.mxu0 0.0
    %855 = vmatprep.subr.mxu0 0.0
    %856 = vmatpush1.msra.mxu0 0.0
    %857 = vmatprep.subr.mxu0 0.0
    %858 = vmatpush1.msra.mxu0 0.0
    %859 = vmatprep.subr.mxu0 0.0
    %860 = vmatpush1.msra.mxu0 0.0
    %861 = vmatprep.subr.mxu0 0.0
    %862 = vmatpush1.msra.mxu0 %v821
    %863 = vmatprep.subr.mxu0 0.0
    %864 = vmatpush1.msra.mxu0 %v820
    %865 = vmatprep.subr.mxu0 0.0
    %866 = vmatpush2.msra.mxu0 0.0
    %867 = vmatprep.subr.mxu0 0.0
    %868 = vmatpush2.msra.mxu0 0.0
    %869 = vmatprep.subr.mxu0 0.0
    %870 = vmatpush2.msra.mxu0 0.0
    %871 = vmatprep.subr.mxu0 0.0
    %872 = vmatpush2.msra.mxu0 0.0
    %873 = vmatprep.subr.mxu0 0.0
    %874 = vmatpush2.msra.mxu0 0.0
    %875 = vmatprep.subr.mxu0 0.0
    %876 = vmatpush2.msra.mxu0 0.0
    %877 = vmatprep.subr.mxu0 0.0
    %878 = vmatpush2.msra.mxu0 0.0
    %879 = vmatprep.subr.mxu0 0.0
    %880 = vmatpush2.msra.mxu0 0.0
    %881 = vmatprep.subr.mxu0 0.0
    %882 = vmatpush2.msra.mxu0 0.0
    %883 = vmatprep.subr.mxu0 0.0
    %884 = vmatpush2.msra.mxu0 0.0
    %885 = vmatprep.subr.mxu0 0.0
    %886 = vmatpush2.msra.mxu0 0.0
    %887 = vmatprep.subr.mxu0 0.0
    %888 = vmatpush2.msra.mxu0 0.0
    %889 = vmatprep.subr.mxu0 0.0
    %890 = vmatpush2.msra.mxu0 0.0
    %891 = vmatprep.subr.mxu0 0.0
    %892 = vmatpush2.msra.mxu0 0.0
    %893 = vmatprep.subr.mxu0 0.0
    %894 = vmatpush2.msra.mxu0 0.0
    %895 = vmatprep.subr.mxu0 0.0
    %896 = vmatpush2.msra.mxu0 0.0
    %897 = vmatprep.mubr.f32.mxu0 0.0
    %898 = vmatmul.mubr.f32.gmra.mxu0 %v831
    %v899 = vpop.f32.mrf.mxu0
    %v900 = vadd.f32 %v827, %v899
    %v901 = vpop.f32.mrf.mxu0
    %902 = vdwg.mxu0
    %v903 = vsel %vm163, %v900, 0.0
    %v904 = vrot.slane %v903, 4
    %v905 = vadd.f32 %v903, %v904
    %v906 = vrot.slane %v905, 2
    %v907 = vadd.f32 %v905, %v906
    %v908 = vrot.slane %v907, 1
    %v909 = vadd.f32 %v907, %v908
    %v910 = vrcp.pop 8.0
    %v911 = vmul.f32 %v909, %v910
    %v912 = vsub.f32 %v900, %v911
    %v913 = vmul.f32 %v912, %v912
    %v914 = vsel %vm163, %v913, 0.0
    %v915 = vrot.slane %v914, 4
    %v916 = vadd.f32 %v914, %v915
    %v917 = vrot.slane %v916, 2
    %v918 = vadd.f32 %v916, %v917
    %v919 = vrot.slane %v918, 1
    %v920 = vadd.f32 %v918, %v919
    %v921 = vmul.f32 %v920, %v910
    %v922 = vadd.f32 %v921, 1e-05
    %v923 = vrsqrt.pop %v922
    %v924 = vmul.f32 %v912, %v923
    %v925 = vld [vmem:[%s9] sm:$0x1]
    %v927 = vlaneseq
    %v928 = vshrl.u32 %v927, 7
    %v929 = vsub.s32 0, %v928
    %v930 = vrot.slane %v925, %v929
    %v932 = vmul.f32 %v924, %v930
    %v933 = vld [vmem:[%s10] sm:$0x1]
    %v935 = vlaneseq
    %v936 = vshrl.u32 %v935, 7
    %v937 = vsub.s32 0, %v936
    %v938 = vrot.slane %v933, %v937
    %v940 = vadd.f32 %v932, %v938
    %v941 = vtanh.pop %v940
    %v942 = vld [vmem:[%s12] sm:$0x1]
    %v944 = vlaneseq
    %v945 = vshrl.u32 %v944, 7
    %v946 = vsub.s32 0, %v945
    %v947 = vrot.slane %v942, %v946
    %v949 = vmul.f32 %v491, %v947
    %v950 = vld [vmem:[%s13] sm:$0x1]
    %v952 = vlaneseq
    %v953 = vshrl.u32 %v952, 7
    %v954 = vsub.s32 0, %v953
    %v955 = vrot.slane %v950, %v954
    %v957 = vadd.f32 %v949, %v955
    %v958 = vld [vmem:[#allocation13] sm:$0xff]
    %v959 = vld [vmem:[#allocation13 + $0x8] sm:$0xff]
    %v960 = vld [vmem:[#allocation13 + $0x10] sm:$0xff]
    %v961 = vld [vmem:[#allocation13 + $0x18] sm:$0xff]
    %v963 = vsel %vm163, %v957, 0
    %965 = vmatprep.subr.mxu0 0.0
    %966 = vmatpush1.msra.mxu0 0.0
    %967 = vmatprep.subr.mxu0 0.0
    %968 = vmatpush1.msra.mxu0 0.0
    %969 = vmatprep.subr.mxu0 0.0
    %970 = vmatpush1.msra.mxu0 0.0
    %971 = vmatprep.subr.mxu0 0.0
    %972 = vmatpush1.msra.mxu0 0.0
    %973 = vmatprep.subr.mxu0 0.0
    %974 = vmatpush1.msra.mxu0 0.0
    %975 = vmatprep.subr.mxu0 0.0
    %976 = vmatpush1.msra.mxu0 0.0
    %977 = vmatprep.subr.mxu0 0.0
    %978 = vmatpush1.msra.mxu0 0.0
    %979 = vmatprep.subr.mxu0 0.0
    %980 = vmatpush1.msra.mxu0 0.0
    %981 = vmatprep.subr.mxu0 0.0
    %982 = vmatpush1.msra.mxu0 0.0
    %983 = vmatprep.subr.mxu0 0.0
    %984 = vmatpush1.msra.mxu0 0.0
    %985 = vmatprep.subr.mxu0 0.0
    %986 = vmatpush1.msra.mxu0 0.0
    %987 = vmatprep.subr.mxu0 0.0
    %988 = vmatpush1.msra.mxu0 0.0
    %989 = vmatprep.subr.mxu0 0.0
    %990 = vmatpush1.msra.mxu0 %v961
    %991 = vmatprep.subr.mxu0 0.0
    %992 = vmatpush1.msra.mxu0 %v960
    %993 = vmatprep.subr.mxu0 0.0
    %994 = vmatpush1.msra.mxu0 %v959
    %995 = vmatprep.subr.mxu0 0.0
    %996 = vmatpush1.msra.mxu0 %v958
    %997 = vmatprep.subr.mxu0 0.0
    %998 = vmatpush2.msra.mxu0 0.0
    %999 = vmatprep.subr.mxu0 0.0
    %1000 = vmatpush2.msra.mxu0 0.0
    %1001 = vmatprep.subr.mxu0 0.0
    %1002 = vmatpush2.msra.mxu0 0.0
    %1003 = vmatprep.subr.mxu0 0.0
    %1004 = vmatpush2.msra.mxu0 0.0
    %1005 = vmatprep.subr.mxu0 0.0
    %1006 = vmatpush2.msra.mxu0 0.0
    %1007 = vmatprep.subr.mxu0 0.0
    %1008 = vmatpush2.msra.mxu0 0.0
    %1009 = vmatprep.subr.mxu0 0.0
    %1010 = vmatpush2.msra.mxu0 0.0
    %1011 = vmatprep.subr.mxu0 0.0
    %1012 = vmatpush2.msra.mxu0 0.0
    %1013 = vmatprep.subr.mxu0 0.0
    %1014 = vmatpush2.msra.mxu0 0.0
    %1015 = vmatprep.subr.mxu0 0.0
    %1016 = vmatpush2.msra.mxu0 0.0
    %1017 = vmatprep.subr.mxu0 0.0
    %1018 = vmatpush2.msra.mxu0 0.0
    %1019 = vmatprep.subr.mxu0 0.0
    %1020 = vmatpush2.msra.mxu0 0.0
    %1021 = vmatprep.subr.mxu0 0.0
    %1022 = vmatpush2.msra.mxu0 0.0
    %1023 = vmatprep.subr.mxu0 0.0
    %1024 = vmatpush2.msra.mxu0 0.0
    %1025 = vmatprep.subr.mxu0 0.0
    %1026 = vmatpush2.msra.mxu0 0.0
    %1027 = vmatprep.subr.mxu0 0.0
    %1028 = vmatpush2.msra.mxu0 0.0
    %1029 = vmatprep.mubr.f32.mxu0 0.0
    %1030 = vmatmul.mubr.f32.gmra.mxu0 %v963
    %v1031 = vpop.f32.mrf.mxu0
    %v1032 = vadd.f32 0.0, %v1031
    %v1033 = vpop.f32.mrf.mxu0
    %1034 = vdwg.mxu0
    %v1036 = vsel %vm586, %v1032, 0
    %1038 = vmatprep.subr.mxu0 0.0
    %1039 = vmatpush1.xpose.msra.mxu0 0.0
    %1040 = vmatprep.subr.mxu0 0.0
    %1041 = vmatpush1.xpose.msra.mxu0 0.0
    %1042 = vmatprep.subr.mxu0 0.0
    %1043 = vmatpush1.xpose.msra.mxu0 0.0
    %1044 = vmatprep.subr.mxu0 0.0
    %1045 = vmatpush1.xpose.msra.mxu0 0.0
    %1046 = vmatprep.subr.mxu0 0.0
    %1047 = vmatpush1.xpose.msra.mxu0 0.0
    %1048 = vmatprep.subr.mxu0 0.0
    %1049 = vmatpush1.xpose.msra.mxu0 0.0
    %1050 = vmatprep.subr.mxu0 0.0
    %1051 = vmatpush1.xpose.msra.mxu0 0.0
    %1052 = vmatprep.subr.mxu0 0.0
    %1053 = vmatpush1.xpose.msra.mxu0 0.0
    %1054 = vmatprep.subr.mxu0 0.0
    %1055 = vmatpush1.xpose.msra.mxu0 0.0
    %1056 = vmatprep.subr.mxu0 0.0
    %1057 = vmatpush1.xpose.msra.mxu0 0.0
    %1058 = vmatprep.subr.mxu0 0.0
    %1059 = vmatpush1.xpose.msra.mxu0 0.0
    %1060 = vmatprep.subr.mxu0 0.0
    %1061 = vmatpush1.xpose.msra.mxu0 0.0
    %1062 = vmatprep.subr.mxu0 0.0
    %1063 = vmatpush1.xpose.msra.mxu0 0.0
    %1064 = vmatprep.subr.mxu0 0.0
    %1065 = vmatpush1.xpose.msra.mxu0 0.0
    %1066 = vmatprep.subr.mxu0 0.0
    %1067 = vmatpush1.xpose.msra.mxu0 0.0
    %1068 = vmatprep.subr.mxu0 0.0
    %1069 = vmatpush1.xpose.msra.mxu0 %v1036
    %1070 = vmatprep.subr.mxu0 0.0
    %1071 = vmatpush2.xpose.msra.mxu0 0.0
    %1072 = vmatprep.subr.mxu0 0.0
    %1073 = vmatpush2.xpose.msra.mxu0 0.0
    %1074 = vmatprep.subr.mxu0 0.0
    %1075 = vmatpush2.xpose.msra.mxu0 0.0
    %1076 = vmatprep.subr.mxu0 0.0
    %1077 = vmatpush2.xpose.msra.mxu0 0.0
    %1078 = vmatprep.subr.mxu0 0.0
    %1079 = vmatpush2.xpose.msra.mxu0 0.0
    %1080 = vmatprep.subr.mxu0 0.0
    %1081 = vmatpush2.xpose.msra.mxu0 0.0
    %1082 = vmatprep.subr.mxu0 0.0
    %1083 = vmatpush2.xpose.msra.mxu0 0.0
    %1084 = vmatprep.subr.mxu0 0.0
    %1085 = vmatpush2.xpose.msra.mxu0 0.0
    %1086 = vmatprep.subr.mxu0 0.0
    %1087 = vmatpush2.xpose.msra.mxu0 0.0
    %1088 = vmatprep.subr.mxu0 0.0
    %1089 = vmatpush2.xpose.msra.mxu0 0.0
    %1090 = vmatprep.subr.mxu0 0.0
    %1091 = vmatpush2.xpose.msra.mxu0 0.0
    %1092 = vmatprep.subr.mxu0 0.0
    %1093 = vmatpush2.xpose.msra.mxu0 0.0
    %1094 = vmatprep.subr.mxu0 0.0
    %1095 = vmatpush2.xpose.msra.mxu0 0.0
    %1096 = vmatprep.subr.mxu0 0.0
    %1097 = vmatpush2.xpose.msra.mxu0 0.0
    %1098 = vmatprep.subr.mxu0 0.0
    %1099 = vmatpush2.xpose.msra.mxu0 0.0
    %1100 = vmatprep.subr.mxu0 0.0
    %1101 = vmatpush2.xpose.msra.mxu0 0.0
    %1102 = vmatprep.mubr.f32.mxu0 0.0
    %1103 = vmatmul.mubr.f32.gmra.mxu0 %v1036
    %v1104 = vpop.f32.mrf.mxu0
    %v1105 = vadd.f32 0.0, %v1104
    %v1106 = vpop.f32.mrf.mxu0
    %1107 = vdwg.mxu0
    %v1108 = vsel %vm660, %v1105, -inf
    %1109 = vmax.xlane.f32.xlu0 %v1108
    %v1110 = vpop.xlane.xlu0 %1109
    %v1111 = vsub.f32 %v1105, %v1110
    %v1112 = vmul.f32 %v1111, 1.442695
    %v1113 = vpow.pop %v1112
    %v1114 = vsel %vm660, %v1113, 0.0
    %1115 = vadd.xlane.f32.xlu0 %v1114
    %v1116 = vpop.xlane.xlu0 %1115
    %v1117 = vrcp.pop %v1116
    %v1118 = vmul.f32 %v1113, %v1117
    %1119 = vmatprep.subr.mxu0 0.0
    %1120 = vmatpush1.xpose.msra.mxu0 0.0
    %1121 = vmatprep.subr.mxu0 0.0
    %1122 = vmatpush1.xpose.msra.mxu0 0.0
    %1123 = vmatprep.subr.mxu0 0.0
    %1124 = vmatpush1.xpose.msra.mxu0 0.0
    %1125 = vmatprep.subr.mxu0 0.0
    %1126 = vmatpush1.xpose.msra.mxu0 0.0
    %1127 = vmatprep.subr.mxu0 0.0
    %1128 = vmatpush1.xpose.msra.mxu0 0.0
    %1129 = vmatprep.subr.mxu0 0.0
    %1130 = vmatpush1.xpose.msra.mxu0 0.0
    %1131 = vmatprep.subr.mxu0 0.0
    %1132 = vmatpush1.xpose.msra.mxu0 0.0
    %1133 = vmatprep.subr.mxu0 0.0
    %1134 = vmatpush1.xpose.msra.mxu0 0.0
    %1135 = vmatprep.subr.mxu0 0.0
    %1136 = vmatpush1.xpose.msra.mxu0 0.0
    %1137 = vmatprep.subr.mxu0 0.0
    %1138 = vmatpush1.xpose.msra.mxu0 0.0
    %1139 = vmatprep.subr.mxu0 0.0
    %1140 = vmatpush1.xpose.msra.mxu0 0.0
    %1141 = vmatprep.subr.mxu0 0.0
    %1142 = vmatpush1.xpose.msra.mxu0 0.0
    %1143 = vmatprep.subr.mxu0 0.0
    %1144 = vmatpush1.xpose.msra.mxu0 0.0
    %1145 = vmatprep.subr.mxu0 0.0
    %1146 = vmatpush1.xpose.msra.mxu0 0.0
    %1147 = vmatprep.subr.mxu0 0.0
    %1148 = vmatpush1.xpose.msra.mxu0 0.0
    %1149 = vmatprep.subr.mxu0 0.0
    %1150 = vmatpush1.xpose.msra.mxu0 %v963
    %1151 = vmatprep.subr.mxu0 0.0
    %1152 = vmatpush2.xpose.msra.mxu0 0.0
    %1153 = vmatprep.subr.mxu0 0.0
    %1154 = vmatpush2.xpose.msra.mxu0 0.0
    %1155 = vmatprep.subr.mxu0 0.0
    %1156 = vmatpush2.xpose.msra.mxu0 0.0
    %1157 = vmatprep.subr.mxu0 0.0
    %1158 = vmatpush2.xpose.msra.mxu0 0.0
    %1159 = vmatprep.subr.mxu0 0.0
    %1160 = vmatpush2.xpose.msra.mxu0 0.0
    %1161 = vmatprep.subr.mxu0 0.0
    %1162 = vmatpush2.xpose.msra.mxu0 0.0
    %1163 = vmatprep.subr.mxu0 0.0
    %1164 = vmatpush2.xpose.msra.mxu0 0.0
    %1165 = vmatprep.subr.mxu0 0.0
    %1166 = vmatpush2.xpose.msra.mxu0 0.0
    %1167 = vmatprep.subr.mxu0 0.0
    %1168 = vmatpush2.xpose.msra.mxu0 0.0
    %1169 = vmatprep.subr.mxu0 0.0
    %1170 = vmatpush2.xpose.msra.mxu0 0.0
    %1171 = vmatprep.subr.mxu0 0.0
    %1172 = vmatpush2.xpose.msra.mxu0 0.0
    %1173 = vmatprep.subr.mxu0 0.0
    %1174 = vmatpush2.xpose.msra.mxu0 0.0
    %1175 = vmatprep.subr.mxu0 0.0
    %1176 = vmatpush2.xpose.msra.mxu0 0.0
    %1177 = vmatprep.subr.mxu0 0.0
    %1178 = vmatpush2.xpose.msra.mxu0 0.0
    %1179 = vmatprep.subr.mxu0 0.0
    %1180 = vmatpush2.xpose.msra.mxu0 0.0
    %1181 = vmatprep.subr.mxu0 0.0
    %1182 = vmatpush2.xpose.msra.mxu0 0.0
    %1183 = vmatprep.mubr.f32.mxu0 0.0
    %1184 = vmatmul.mubr.f32.gmra.mxu0 %v674
    %v1185 = vpop.f32.mrf.mxu0
    %v1186 = vadd.f32 0.0, %v1185
    %v1187 = vpop.f32.mrf.mxu0
    %1188 = vdwg.mxu0
    %v1189 = vmul.f32 %v1186, %v1118
    %v1191 = vsel %vm660, %v1189, 0
    %1193 = vmatprep.subr.mxu0 0.0
    %1194 = vmatpush1.msra.mxu0 0.0
    %1195 = vmatprep.subr.mxu0 0.0
    %1196 = vmatpush1.msra.mxu0 0.0
    %1197 = vmatprep.subr.mxu0 0.0
    %1198 = vmatpush1.msra.mxu0 0.0
    %1199 = vmatprep.subr.mxu0 0.0
    %1200 = vmatpush1.msra.mxu0 0.0
    %1201 = vmatprep.subr.mxu0 0.0
    %1202 = vmatpush1.msra.mxu0 0.0
    %1203 = vmatprep.subr.mxu0 0.0
    %1204 = vmatpush1.msra.mxu0 0.0
    %1205 = vmatprep.subr.mxu0 0.0
    %1206 = vmatpush1.msra.mxu0 0.0
    %1207 = vmatprep.subr.mxu0 0.0
    %1208 = vmatpush1.msra.mxu0 0.0
    %1209 = vmatprep.subr.mxu0 0.0
    %1210 = vmatpush1.msra.mxu0 0.0
    %1211 = vmatprep.subr.mxu0 0.0
    %1212 = vmatpush1.msra.mxu0 0.0
    %1213 = vmatprep.subr.mxu0 0.0
    %1214 = vmatpush1.msra.mxu0 0.0
    %1215 = vmatprep.subr.mxu0 0.0
    %1216 = vmatpush1.msra.mxu0 0.0
    %1217 = vmatprep.subr.mxu0 0.0
    %1218 = vmatpush1.msra.mxu0 0.0
    %1219 = vmatprep.subr.mxu0 0.0
    %1220 = vmatpush1.msra.mxu0 0.0
    %1221 = vmatprep.subr.mxu0 0.0
    %1222 = vmatpush1.msra.mxu0 0.0
    %1223 = vmatprep.subr.mxu0 0.0
    %1224 = vmatpush1.msra.mxu0 %v941
    %1225 = vmatprep.subr.mxu0 0.0
    %1226 = vmatpush2.msra.mxu0 0.0
    %1227 = vmatprep.subr.mxu0 0.0
    %1228 = vmatpush2.msra.mxu0 0.0
    %1229 = vmatprep.subr.mxu0 0.0
    %1230 = vmatpush2.msra.mxu0 0.0
    %1231 = vmatprep.subr.mxu0 0.0
    %1232 = vmatpush2.msra.mxu0 0.0
    %1233 = vmatprep.subr.mxu0 0.0
    %1234 = vmatpush2.msra.mxu0 0.0
    %1235 = vmatprep.subr.mxu0 0.0
    %1236 = vmatpush2.msra.mxu0 0.0
    %1237 = vmatprep.subr.mxu0 0.0
    %1238 = vmatpush2.msra.mxu0 0.0
    %1239 = vmatprep.subr.mxu0 0.0
    %1240 = vmatpush2.msra.mxu0 0.0
    %1241 = vmatprep.subr.mxu0 0.0
    %1242 = vmatpush2.msra.mxu0 0.0
    %1243 = vmatprep.subr.mxu0 0.0
    %1244 = vmatpush2.msra.mxu0 0.0
    %1245 = vmatprep.subr.mxu0 0.0
    %1246 = vmatpush2.msra.mxu0 0.0
    %1247 = vmatprep.subr.mxu0 0.0
    %1248 = vmatpush2.msra.mxu0 0.0
    %1249 = vmatprep.subr.mxu0 0.0
    %1250 = vmatpush2.msra.mxu0 0.0
    %1251 = vmatprep.subr.mxu0 0.0
    %1252 = vmatpush2.msra.mxu0 0.0
    %1253 = vmatprep.subr.mxu0 0.0
    %1254 = vmatpush2.msra.mxu0 0.0
    %1255 = vmatprep.subr.mxu0 0.0
    %1256 = vmatpush2.msra.mxu0 0.0
    %1257 = vmatprep.mubr.f32.mxu0 0.0
    %1258 = vmatmul.mubr.f32.gmra.mxu0 %v1191
    %v1259 = vpop.f32.mrf.mxu0
    %v1260 = vadd.f32 0.0, %v1259
    %v1261 = vpop.f32.mrf.mxu0
    %1262 = vdwg.mxu0
    %v1263 = vld [vmem:[#allocation14] sm:$0xff]
    %v1264 = vld [vmem:[#allocation14 + $0x8] sm:$0xff]
    %v1265 = vld [vmem:[#allocation14 + $0x10] sm:$0xff]
    %v1266 = vld [vmem:[#allocation14 + $0x18] sm:$0xff]
    %v1267 = vld [vmem:[%s15] sm:$0x1]
    %v1269 = vlaneseq
    %v1270 = vshrl.u32 %v1269, 7
    %v1271 = vsub.s32 0, %v1270
    %v1272 = vrot.slane %v1267, %v1271
    %v1275 = vsel %vm163, %v1260, 0
    %1277 = vmatprep.subr.mxu0 0.0
    %1278 = vmatpush1.msra.mxu0 0.0
    %1279 = vmatprep.subr.mxu0 0.0
    %1280 = vmatpush1.msra.mxu0 0.0
    %1281 = vmatprep.subr.mxu0 0.0
    %1282 = vmatpush1.msra.mxu0 0.0
    %1283 = vmatprep.subr.mxu0 0.0
    %1284 = vmatpush1.msra.mxu0 0.0
    %1285 = vmatprep.subr.mxu0 0.0
    %1286 = vmatpush1.msra.mxu0 0.0
    %1287 = vmatprep.subr.mxu0 0.0
    %1288 = vmatpush1.msra.mxu0 0.0
    %1289 = vmatprep.subr.mxu0 0.0
    %1290 = vmatpush1.msra.mxu0 0.0
    %1291 = vmatprep.subr.mxu0 0.0
    %1292 = vmatpush1.msra.mxu0 0.0
    %1293 = vmatprep.subr.mxu0 0.0
    %1294 = vmatpush1.msra.mxu0 0.0
    %1295 = vmatprep.subr.mxu0 0.0
    %1296 = vmatpush1.msra.mxu0 0.0
    %1297 = vmatprep.subr.mxu0 0.0
    %1298 = vmatpush1.msra.mxu0 0.0
    %1299 = vmatprep.subr.mxu0 0.0
    %1300 = vmatpush1.msra.mxu0 0.0
    %1301 = vmatprep.subr.mxu0 0.0
    %1302 = vmatpush1.msra.mxu0 %v1266
    %1303 = vmatprep.subr.mxu0 0.0
    %1304 = vmatpush1.msra.mxu0 %v1265
    %1305 = vmatprep.subr.mxu0 0.0
    %1306 = vmatpush1.msra.mxu0 %v1264
    %1307 = vmatprep.subr.mxu0 0.0
    %1308 = vmatpush1.msra.mxu0 %v1263
    %1309 = vmatprep.subr.mxu0 0.0
    %1310 = vmatpush2.msra.mxu0 0.0
    %1311 = vmatprep.subr.mxu0 0.0
    %1312 = vmatpush2.msra.mxu0 0.0
    %1313 = vmatprep.subr.mxu0 0.0
    %1314 = vmatpush2.msra.mxu0 0.0
    %1315 = vmatprep.subr.mxu0 0.0
    %1316 = vmatpush2.msra.mxu0 0.0
    %1317 = vmatprep.subr.mxu0 0.0
    %1318 = vmatpush2.msra.mxu0 0.0
    %1319 = vmatprep.subr.mxu0 0.0
    %1320 = vmatpush2.msra.mxu0 0.0
    %1321 = vmatprep.subr.mxu0 0.0
    %1322 = vmatpush2.msra.mxu0 0.0
    %1323 = vmatprep.subr.mxu0 0.0
    %1324 = vmatpush2.msra.mxu0 0.0
    %1325 = vmatprep.subr.mxu0 0.0
    %1326 = vmatpush2.msra.mxu0 0.0
    %1327 = vmatprep.subr.mxu0 0.0
    %1328 = vmatpush2.msra.mxu0 0.0
    %1329 = vmatprep.subr.mxu0 0.0
    %1330 = vmatpush2.msra.mxu0 0.0
    %1331 = vmatprep.subr.mxu0 0.0
    %1332 = vmatpush2.msra.mxu0 0.0
    %1333 = vmatprep.subr.mxu0 0.0
    %1334 = vmatpush2.msra.mxu0 0.0
    %1335 = vmatprep.subr.mxu0 0.0
    %1336 = vmatpush2.msra.mxu0 0.0
    %1337 = vmatprep.subr.mxu0 0.0
    %1338 = vmatpush2.msra.mxu0 0.0
    %1339 = vmatprep.subr.mxu0 0.0
    %1340 = vmatpush2.msra.mxu0 0.0
    %1341 = vmatprep.mubr.f32.mxu0 0.0
    %1342 = vmatmul.mubr.f32.gmra.mxu0 %v1275
    %v1343 = vpop.f32.mrf.mxu0
    %v1344 = vadd.f32 %v1272, %v1343
    %v1345 = vpop.f32.mrf.mxu0
    %1346 = vdwg.mxu0
    %v1347 = vsel %vm163, %v1344, 0.0
    %v1348 = vrot.slane %v1347, 4
    %v1349 = vadd.f32 %v1347, %v1348
    %v1350 = vrot.slane %v1349, 2
    %v1351 = vadd.f32 %v1349, %v1350
    %v1352 = vrot.slane %v1351, 1
    %v1353 = vadd.f32 %v1351, %v1352
    %v1354 = vmul.f32 %v1353, %v910
    %v1355 = vsub.f32 %v1344, %v1354
    %v1356 = vmul.f32 %v1355, %v1355
    %v1357 = vsel %vm163, %v1356, 0.0
    %v1358 = vrot.slane %v1357, 4
    %v1359 = vadd.f32 %v1357, %v1358
    %v1360 = vrot.slane %v1359, 2
    %v1361 = vadd.f32 %v1359, %v1360
    %v1362 = vrot.slane %v1361, 1
    %v1363 = vadd.f32 %v1361, %v1362
    %v1364 = vmul.f32 %v1363, %v910
    %v1365 = vadd.f32 %v1364, 1e-05
    %v1366 = vrsqrt.pop %v1365
    %v1367 = vmul.f32 %v1355, %v1366
    %v1368 = vld [vmem:[%s16] sm:$0x1]
    %v1370 = vlaneseq
    %v1371 = vshrl.u32 %v1370, 7
    %v1372 = vsub.s32 0, %v1371
    %v1373 = vrot.slane %v1368, %v1372
    %v1375 = vmul.f32 %v1367, %v1373
    %v1376 = vld [vmem:[%s17] sm:$0x1]
    %v1378 = vlaneseq
    %v1379 = vshrl.u32 %v1378, 7
    %v1380 = vsub.s32 0, %v1379
    %v1381 = vrot.slane %v1376, %v1380
    %v1383 = vadd.f32 %v1375, %v1381
    %v1384 = vtanh.pop %v1383
    %1385 = vst.msk [vmem:[#allocation16] sm:$0xff] %vm163, %v1384
    // Predicated region
    $region106: #{tpu_custom_call.1} parent=1 // pred_check
      _
    $region107: #{tpu_custom_call.1} parent=1 // pred_check_branch
      %1387 = sbr.rel (0) target = $region109
    $region108: #{tpu_custom_call.1} parent=1 // pred_region
      %s1389 = ssub.s32 128, 128
      %1390 = vsyncadd [#allocation4], %s1389
      %s1392 = sshll.u32 [#allocation16], 4
      %s1393 = int_to_ptr.vmem [resolvable:$true] %s1392
      %1395 = dma.vmem_to_hbm [thread:$0]  %s1393, 128, %s18, [#allocation4]
    $region109: #{tpu_custom_call.1} parent=1 // pred_fallthru
      _
    // Predicated region
    $region110: #{tpu_custom_call.1} parent=1 // pred_check
      _
    $region111: #{tpu_custom_call.1} parent=1 // pred_check_branch
      %1397 = sbr.rel (0) target = $region113
    $region112: #{tpu_custom_call.1} parent=1 // pred_region
      %1398 = dma.done [#allocation4], 128
    $region113: #{tpu_custom_call.1} parent=1 // pred_fallthru
      _
    %1399 = vsyncpa [#allocation3], 1
    %1400 = vsyncpa [#allocation6], 1
    %1401 = vsyncpa [#allocation9], 1
    %1402 = vsyncpa [#allocation12], 1
    %1403 = vsyncpa [#allocation15], 1
    %1404 = vsyncpa [#allocation4], 1

</llo_original>
